<compile_context>
chip_gen: v5e
topology: v5e:2x2
jax: 0.10.0
libtpu: 0.0.40
codegen_flags: <defaults>
</compile_context>

<pallas_src>
import math
from functools import partial

import jax
import jax.numpy as jnp
import numpy as np
from jax.experimental import pallas as pl
from jax.experimental.pallas import tpu as pltpu


# ----------------------------------------------------------------------------
# Kernel
# ----------------------------------------------------------------------------
def _mha_kernel(*refs, num_heads, head_dim, seq_len, batch_block, inv_scale,
                compute_dtype, self_attn, has_mask):
    """Fused multi-head attention for `batch_block` batch elements.

    Ref layout (inputs..., outputs...):
      self_attn:  x2d, wqkv, bqkv, wo, bo, [mask], out2d, attn
      otherwise:  q2d, k2d, v2d, wqkv, bqkv, wo, bo, [mask], out2d, attn
    Activations are presented flattened as (batch_block*T, D) rows.
    """
    refs = list(refs)
    attn_ref = refs.pop()
    out_ref = refs.pop()
    mask_ref = refs.pop() if has_mask else None
    if self_attn:
        xq_ref, wqkv_ref, bqkv_ref, wo_ref, bo_ref = refs
    else:
        xq_ref, xk_ref, xv_ref, wqkv_ref, bqkv_ref, wo_ref, bo_ref = refs

    H, hd, T, BB = num_heads, head_dim, seq_len, batch_block
    D = H * hd
    cdt = compute_dtype

    w = wqkv_ref[...].astype(cdt)          # (D, 3D)  packed [Wq | Wk | Wv]
    b = bqkv_ref[...]                      # (1, 3D)  f32
    wo = wo_ref[...].astype(cdt)           # (D, D)
    bo = bo_ref[...]                       # (1, D)   f32
    mask = mask_ref[...] if has_mask else None   # (T, T) f32 additive mask

    if self_attn:
        # Fused QKV projection: one MXU pass over all rows of the batch block.
        x = xq_ref[...].astype(cdt)                               # (BB*T, D)
        qkv = jnp.dot(x, w, preferred_element_type=jnp.float32) + b   # (BB*T, 3D)
        qf = qkv[:, 0:D]
        kf = qkv[:, D:2 * D]
        vf = qkv[:, 2 * D:3 * D]
    else:
        # Cross-attention fallback: separate sources, still packed weights.
        qf = jnp.dot(xq_ref[...].astype(cdt), w[:, 0:D],
                     preferred_element_type=jnp.float32) + b[:, 0:D]
        kf = jnp.dot(xk_ref[...].astype(cdt), w[:, D:2 * D],
                     preferred_element_type=jnp.float32) + b[:, D:2 * D]
        vf = jnp.dot(xv_ref[...].astype(cdt), w[:, 2 * D:3 * D],
                     preferred_element_type=jnp.float32) + b[:, 2 * D:3 * D]

    # Attention: static unroll over (batch element, head) inside one grid step.
    # The head concat is eliminated by contracting each head's context against
    # its (hd, D) slice of Wo and accumulating into the output rows.
    for bi in range(BB):
        r0 = bi * T
        acc = jnp.zeros((T, D), jnp.float32)
        for h in range(H):
            c0 = h * hd
            qh = (qf[r0:r0 + T, c0:c0 + hd] * inv_scale).astype(cdt)   # (T, hd)
            kh = kf[r0:r0 + T, c0:c0 + hd].astype(cdt)                 # (T, hd)
            vh = vf[r0:r0 + T, c0:c0 + hd].astype(cdt)                 # (T, hd)

            s = jnp.dot(qh, kh.T, preferred_element_type=jnp.float32)  # (T, T)
            if has_mask:
                s = s + mask
            s = s - jnp.max(s, axis=-1, keepdims=True)
            p = jnp.exp(s)
            p = p * pl.reciprocal(jnp.sum(p, axis=-1, keepdims=True), approx=True)

            attn_ref[bi, h, :, :] = p.astype(attn_ref.dtype)

            # dropout(p=0 / eval) on p is the identity.
            ctx = jnp.dot(p.astype(cdt), vh, preferred_element_type=jnp.float32)
            acc = acc + jnp.dot(ctx.astype(cdt), wo[c0:c0 + hd, :],
                                preferred_element_type=jnp.float32)
        out_ref[r0:r0 + T, :] = (acc + bo).astype(out_ref.dtype)


# ----------------------------------------------------------------------------
# Wrapper
# ----------------------------------------------------------------------------
def _full_spec(shape):
    zeros = (0,) * len(shape)
    return pl.BlockSpec(shape, lambda i, _z=zeros: _z)


def _vmem_limit_bytes(bb, T, D, H, n_acts, has_mask):
    f32 = 4
    blocks = n_acts * bb * T * D * f32                    # activation block(s)
    blocks += (D * 3 * D + 3 * D + D * D + D) * f32       # packed weights/biases
    blocks += bb * T * D * f32 + bb * H * T * T * f32     # outputs
    if has_mask:
        blocks += T * T * f32
    est = 2 * blocks                                      # double-buffered blocks
    est += 8 * bb * T * 3 * D * f32                       # in-kernel f32 temporaries
    # Generous headroom, floored at 16 MiB, capped below v7x's 64 MiB physical.
    return int(min(max(8 * est, 16 * 2 ** 20), 48 * 2 ** 20))


def custom_multi_head_attention(query, key, value, params, *, num_heads,
                                mask=None, batch_block=None,
                                compute_dtype=jnp.bfloat16,
                                attn_dtype=jnp.float32):
    """Pallas implementation of CustomMultiHeadAttention.forward.

    Returns (output (B,T,D), attn_weights (B,H,T,T)).
    """
    B, T, D = query.shape
    if D % num_heads != 0:
        raise ValueError('d_model must be divisible by num_heads')
    hd = D // num_heads
    if batch_block is None:
        batch_block = B           # collapse the whole batch into one grid step
    assert B % batch_block == 0
    nb = B // batch_block

    self_attn = (query is key) and (query is value)
    has_mask = mask is not None

    wqkv, bqkv, wo, bo = params['wqkv'], params['bqkv'], params['wo'], params['bo']

    act_spec = pl.BlockSpec((batch_block * T, D), lambda i: (i, 0))
    if self_attn:
        acts = (query.reshape(B * T, D),)
    else:
        acts = (query.reshape(B * T, D), key.reshape(B * T, D),
                value.reshape(B * T, D))
    in_specs = [act_spec] * len(acts)
    in_specs += [_full_spec(wqkv.shape), _full_spec(bqkv.shape),
                 _full_spec(wo.shape), _full_spec(bo.shape)]
    operands = list(acts) + [wqkv, bqkv, wo, bo]
    if has_mask:
        # TODO(synk): only (T, T) additive masks supported; general broadcastable
        # (B, H, T, T) masks would need a per-block mask BlockSpec.
        mask = jnp.asarray(mask, jnp.float32)
        assert mask.shape == (T, T)
        in_specs.append(_full_spec(mask.shape))
        operands.append(mask)

    out_specs = (pl.BlockSpec((batch_block * T, D), lambda i: (i, 0)),
                 pl.BlockSpec((batch_block, num_heads, T, T),
                              lambda i: (i, 0, 0, 0)))
    out_shape = (jax.ShapeDtypeStruct((B * T, D), query.dtype),
                 jax.ShapeDtypeStruct((B, num_heads, T, T), attn_dtype))

    kern = partial(_mha_kernel, num_heads=num_heads, head_dim=hd, seq_len=T,
                   batch_block=batch_block, inv_scale=1.0 / math.sqrt(hd),
                   compute_dtype=compute_dtype, self_attn=self_attn,
                   has_mask=has_mask)

    out2d, attn = pl.pallas_call(
        kern,
        out_shape=out_shape,
        grid=(nb,),
        in_specs=in_specs,
        out_specs=out_specs,
        compiler_params=pltpu.CompilerParams(
            dimension_semantics=("parallel",),   # batch blocks are independent
            vmem_limit_bytes=_vmem_limit_bytes(batch_block, T, D, num_heads,
                                               len(acts), has_mask)),
    )(*operands)
    return out2d.reshape(B, T, D), attn


# ----------------------------------------------------------------------------
# Pure-JAX reference (f32) for correctness checks
# ----------------------------------------------------------------------------
def ref_mha(query, key, value, params, *, num_heads, mask=None):
    B, T, D = query.shape
    hd = D // num_heads
    wqkv, bqkv = params['wqkv'], params['bqkv']
    wq, wk, wv = wqkv[:, :D], wqkv[:, D:2 * D], wqkv[:, 2 * D:]
    bq, bk, bv = bqkv[:, :D], bqkv[:, D:2 * D], bqkv[:, 2 * D:]
    Q = (query @ wq + bq).reshape(B, T, num_heads, hd).transpose(0, 2, 1, 3)
    K = (key @ wk + bk).reshape(B, T, num_heads, hd).transpose(0, 2, 1, 3)
    V = (value @ wv + bv).reshape(B, T, num_heads, hd).transpose(0, 2, 1, 3)
    s = jnp.einsum('bhqd,bhkd->bhqk', Q, K) / math.sqrt(hd)
    if mask is not None:
        s = s + mask
    p = jax.nn.softmax(s, axis=-1)
    ctx = jnp.einsum('bhqk,bhkd->bhqd', p, V).transpose(0, 2, 1, 3).reshape(B, T, D)
    out = ctx @ params['wo'] + params['bo']
    return out, p


# ----------------------------------------------------------------------------
# Parameters (PyTorch nn.Linear-style init, stored as (in, out); QKV packed)
# ----------------------------------------------------------------------------
def make_params(key, d_model):
    def linear(k, fan_in, fan_out):
        kw, kb = jax.random.split(k)
        bound = 1.0 / math.sqrt(fan_in)
        w = jax.random.uniform(kw, (fan_in, fan_out), jnp.float32, -bound, bound)
        b = jax.random.uniform(kb, (1, fan_out), jnp.float32, -bound, bound)
        return w, b

    kq, kk, kv, ko = jax.random.split(key, 4)
    wq, bq = linear(kq, d_model, d_model)
    wk, bk = linear(kk, d_model, d_model)
    wv, bv = linear(kv, d_model, d_model)
    wo, bo = linear(ko, d_model, d_model)
    return dict(
        wqkv=jnp.concatenate([wq, wk, wv], axis=1),   # (D, 3D) fused QKV weight
        bqkv=jnp.concatenate([bq, bk, bv], axis=1),   # (1, 3D) fused QKV bias
        wo=wo,                                        # (D, D)
        bo=bo,                                        # (1, D)
    )


# ----------------------------------------------------------------------------
if __name__ == "__main__":
    B, T, D, H = 2, 8, 32, 4

    key = jax.random.PRNGKey(0)
    kp, kx, kkv = jax.random.split(key, 3)
    params = make_params(kp, D)
    x = jax.random.normal(kx, (B, T, D), jnp.float32)

    # 1) self-attention, no mask, f32 compute  (tight numerical check)
    out, attn = custom_multi_head_attention(x, x, x, params, num_heads=H,
                                            compute_dtype=jnp.float32)
    out, attn = jax.block_until_ready((out, attn))
    ro, ra = ref_mha(x, x, x, params, num_heads=H)
    np.testing.assert_allclose(np.asarray(out), np.asarray(ro), rtol=1e-2, atol=1e-2)
    np.testing.assert_allclose(np.asarray(attn), np.asarray(ra), rtol=1e-2, atol=1e-2)
    assert out.shape == (B, T, D) and attn.shape == (B, H, T, T)

    # 2) self-attention + causal additive mask, bf16 matmul operands (perf config)
    causal = jnp.where(jnp.tril(jnp.ones((T, T), bool)), 0.0, -1e9).astype(jnp.float32)
    out, attn = custom_multi_head_attention(x, x, x, params, num_heads=H, mask=causal)
    out, attn = jax.block_until_ready((out, attn))
    ro, ra = ref_mha(x, x, x, params, num_heads=H, mask=causal)
    np.testing.assert_allclose(np.asarray(out), np.asarray(ro), rtol=3e-2, atol=3e-2)
    np.testing.assert_allclose(np.asarray(attn), np.asarray(ra), rtol=3e-2, atol=3e-2)

    # 3) cross-attention (key/value from a different source), bf16
    kv = jax.random.normal(kkv, (B, T, D), jnp.float32)
    out, attn = custom_multi_head_attention(x, kv, kv, params, num_heads=H)
    out, attn = jax.block_until_ready((out, attn))
    ro, ra = ref_mha(x, kv, kv, params, num_heads=H)
    np.testing.assert_allclose(np.asarray(out), np.asarray(ro), rtol=3e-2, atol=3e-2)
    np.testing.assert_allclose(np.asarray(attn), np.asarray(ra), rtol=3e-2, atol=3e-2)

    print("KERNEL_OK")
</pallas_src>

<mosaic_0001>
module attributes {stable_mosaic.version = 11 : i64} {
  func.func @_mha_kernel(%arg0: i32, %arg1: memref<16x32xf32, #tpu.memory_space<vmem>>, %arg2: memref<32x96xf32, #tpu.memory_space<vmem>>, %arg3: memref<1x96xf32, #tpu.memory_space<vmem>>, %arg4: memref<32x32xf32, #tpu.memory_space<vmem>>, %arg5: memref<1x32xf32, #tpu.memory_space<vmem>>, %arg6: memref<16x32xf32, #tpu.memory_space<vmem>>, %arg7: memref<2x4x8x8xf32, #tpu.memory_space<vmem>>) attributes {dimension_semantics = [#tpu.dimension_semantics<parallel>], iteration_bounds = array<i64: 1>, scalar_prefetch = 0 : i64, scratch_operands = 0 : i64, tpu.core_type = #tpu.core_type<tc>, window_params = [{transform_indices = @transform_0, window_bounds = array<i64: 16, 32>}, {pipeline_mode = #tpu.pipeline_mode<synchronous>, transform_indices = @transform_1, window_bounds = array<i64: 32, 96>}, {pipeline_mode = #tpu.pipeline_mode<synchronous>, transform_indices = @transform_2, window_bounds = array<i64: 1, 96>}, {pipeline_mode = #tpu.pipeline_mode<synchronous>, transform_indices = @transform_3, window_bounds = array<i64: 32, 32>}, {pipeline_mode = #tpu.pipeline_mode<synchronous>, transform_indices = @transform_4, window_bounds = array<i64: 1, 32>}, {transform_indices = @transform_5, window_bounds = array<i64: 16, 32>}, {transform_indices = @transform_6, window_bounds = array<i64: 2, 4, 8, 8>}]} {
    %c0 = arith.constant 0 : index
    %c0_0 = arith.constant 0 : index
    %0 = vector.load %arg2[%c0, %c0_0] : memref<32x96xf32, #tpu.memory_space<vmem>>, vector<32x96xf32>
    %c0_1 = arith.constant 0 : index
    %c0_2 = arith.constant 0 : index
    %1 = vector.load %arg3[%c0_1, %c0_2] : memref<1x96xf32, #tpu.memory_space<vmem>>, vector<1x96xf32>
    %c0_3 = arith.constant 0 : index
    %c0_4 = arith.constant 0 : index
    %2 = vector.load %arg4[%c0_3, %c0_4] : memref<32x32xf32, #tpu.memory_space<vmem>>, vector<32x32xf32>
    %c0_5 = arith.constant 0 : index
    %c0_6 = arith.constant 0 : index
    %3 = vector.load %arg5[%c0_5, %c0_6] : memref<1x32xf32, #tpu.memory_space<vmem>>, vector<1x32xf32>
    %c0_7 = arith.constant 0 : index
    %c0_8 = arith.constant 0 : index
    %4 = vector.load %arg1[%c0_7, %c0_8] : memref<16x32xf32, #tpu.memory_space<vmem>>, vector<16x32xf32>
    %cst = arith.constant dense<0.000000e+00> : vector<16x96xf32>
    %5 = tpu.matmul %4, %0, %cst {dimension_numbers = #tpu.dot_dimension_numbers<[1], [0], [0], [1], [0, 0, 1, 1], [], []>} : vector<16x32xf32>, vector<32x96xf32>, vector<16x96xf32> -> vector<16x96xf32>
    %6 = vector.broadcast %1 : vector<1x96xf32> to vector<16x96xf32>
    %7 = arith.addf %5, %6 : vector<16x96xf32>
    %8 = vector.extract_strided_slice %7 {offsets = [0, 0], sizes = [16, 32], strides = [1, 1]} : vector<16x96xf32> to vector<16x32xf32>
    %9 = vector.extract_strided_slice %7 {offsets = [0, 32], sizes = [16, 32], strides = [1, 1]} : vector<16x96xf32> to vector<16x32xf32>
    %10 = vector.extract_strided_slice %7 {offsets = [0, 64], sizes = [16, 32], strides = [1, 1]} : vector<16x96xf32> to vector<16x32xf32>
    %cst_9 = arith.constant 0.000000e+00 : f32
    %11 = vector.broadcast %cst_9 : f32 to vector<8x32xf32>
    %12 = vector.extract_strided_slice %8 {offsets = [0, 0], sizes = [8, 8], strides = [1, 1]} : vector<16x32xf32> to vector<8x8xf32>
    %cst_10 = arith.constant 0.353553385 : f32
    %13 = vector.broadcast %cst_10 : f32 to vector<8x8xf32>
    %14 = arith.mulf %12, %13 : vector<8x8xf32>
    %15 = vector.extract_strided_slice %9 {offsets = [0, 0], sizes = [8, 8], strides = [1, 1]} : vector<16x32xf32> to vector<8x8xf32>
    %16 = vector.extract_strided_slice %10 {offsets = [0, 0], sizes = [8, 8], strides = [1, 1]} : vector<16x32xf32> to vector<8x8xf32>
    %17 = tpu.transpose %15, [1, 0] : vector<8x8xf32> -> vector<8x8xf32>
    %cst_11 = arith.constant dense<0.000000e+00> : vector<8x8xf32>
    %18 = tpu.matmul %14, %17, %cst_11 {dimension_numbers = #tpu.dot_dimension_numbers<[1], [0], [0], [1], [0, 0, 1, 1], [], []>} : vector<8x8xf32>, vector<8x8xf32>, vector<8x8xf32> -> vector<8x8xf32>
    %cst_12 = arith.constant dense<0xFF800000> : vector<8xf32>
    %19 = vector.multi_reduction <maximumf>, %18, %cst_12 [1] : vector<8x8xf32> to vector<8xf32>
    %20 = vector.shape_cast %19 : vector<8xf32> to vector<8x1xf32>
    %21 = vector.broadcast %20 : vector<8x1xf32> to vector<8x8xf32>
    %22 = arith.subf %18, %21 : vector<8x8xf32>
    %23 = math.exp %22 : vector<8x8xf32>
    %cst_13 = arith.constant dense<0.000000e+00> : vector<8xf32>
    %24 = vector.multi_reduction <add>, %23, %cst_13 [1] : vector<8x8xf32> to vector<8xf32>
    %25 = vector.shape_cast %24 : vector<8xf32> to vector<8x1xf32>
    %26 = tpu.reciprocal %25 {approx = true} : vector<8x1xf32> -> vector<8x1xf32>
    %27 = vector.broadcast %26 : vector<8x1xf32> to vector<8x8xf32>
    %28 = arith.mulf %23, %27 : vector<8x8xf32>
    %c0_14 = arith.constant 0 : index
    %c0_15 = arith.constant 0 : index
    %c0_16 = arith.constant 0 : index
    %c0_17 = arith.constant 0 : index
    %29 = vector.load %arg7[%c0_14, %c0_15, %c0_16, %c0_17] : memref<2x4x8x8xf32, #tpu.memory_space<vmem>>, vector<1x1x8x8xf32>
    %30 = vector.shape_cast %29 : vector<1x1x8x8xf32> to vector<8x8xf32>
    %31 = vector.shape_cast %28 : vector<8x8xf32> to vector<1x1x8x8xf32>
    tpu.vector_store %arg7[%c0_14, %c0_15, %c0_16, %c0_17], %31 {strides = array<i32>} : memref<2x4x8x8xf32, #tpu.memory_space<vmem>>, vector<1x1x8x8xf32>,
    %cst_18 = arith.constant dense<0.000000e+00> : vector<8x8xf32>
    %32 = tpu.matmul %28, %16, %cst_18 {dimension_numbers = #tpu.dot_dimension_numbers<[1], [0], [0], [1], [0, 0, 1, 1], [], []>} : vector<8x8xf32>, vector<8x8xf32>, vector<8x8xf32> -> vector<8x8xf32>
    %33 = vector.extract_strided_slice %2 {offsets = [0, 0], sizes = [8, 32], strides = [1, 1]} : vector<32x32xf32> to vector<8x32xf32>
    %cst_19 = arith.constant dense<0.000000e+00> : vector<8x32xf32>
    %34 = tpu.matmul %32, %33, %cst_19 {dimension_numbers = #tpu.dot_dimension_numbers<[1], [0], [0], [1], [0, 0, 1, 1], [], []>} : vector<8x8xf32>, vector<8x32xf32>, vector<8x32xf32> -> vector<8x32xf32>
    %35 = arith.addf %11, %34 : vector<8x32xf32>
    %36 = vector.extract_strided_slice %8 {offsets = [0, 8], sizes = [8, 8], strides = [1, 1]} : vector<16x32xf32> to vector<8x8xf32>
    %cst_20 = arith.constant 0.353553385 : f32
    %37 = vector.broadcast %cst_20 : f32 to vector<8x8xf32>
    %38 = arith.mulf %36, %37 : vector<8x8xf32>
    %39 = vector.extract_strided_slice %9 {offsets = [0, 8], sizes = [8, 8], strides = [1, 1]} : vector<16x32xf32> to vector<8x8xf32>
    %40 = vector.extract_strided_slice %10 {offsets = [0, 8], sizes = [8, 8], strides = [1, 1]} : vector<16x32xf32> to vector<8x8xf32>
    %41 = tpu.transpose %39, [1, 0] : vector<8x8xf32> -> vector<8x8xf32>
    %cst_21 = arith.constant dense<0.000000e+00> : vector<8x8xf32>
    %42 = tpu.matmul %38, %41, %cst_21 {dimension_numbers = #tpu.dot_dimension_numbers<[1], [0], [0], [1], [0, 0, 1, 1], [], []>} : vector<8x8xf32>, vector<8x8xf32>, vector<8x8xf32> -> vector<8x8xf32>
    %cst_22 = arith.constant dense<0xFF800000> : vector<8xf32>
    %43 = vector.multi_reduction <maximumf>, %42, %cst_22 [1] : vector<8x8xf32> to vector<8xf32>
    %44 = vector.shape_cast %43 : vector<8xf32> to vector<8x1xf32>
    %45 = vector.broadcast %44 : vector<8x1xf32> to vector<8x8xf32>
    %46 = arith.subf %42, %45 : vector<8x8xf32>
    %47 = math.exp %46 : vector<8x8xf32>
    %cst_23 = arith.constant dense<0.000000e+00> : vector<8xf32>
    %48 = vector.multi_reduction <add>, %47, %cst_23 [1] : vector<8x8xf32> to vector<8xf32>
    %49 = vector.shape_cast %48 : vector<8xf32> to vector<8x1xf32>
    %50 = tpu.reciprocal %49 {approx = true} : vector<8x1xf32> -> vector<8x1xf32>
    %51 = vector.broadcast %50 : vector<8x1xf32> to vector<8x8xf32>
    %52 = arith.mulf %47, %51 : vector<8x8xf32>
    %c0_24 = arith.constant 0 : index
    %c1 = arith.constant 1 : index
    %c0_25 = arith.constant 0 : index
    %c0_26 = arith.constant 0 : index
    %53 = vector.load %arg7[%c0_24, %c1, %c0_25, %c0_26] : memref<2x4x8x8xf32, #tpu.memory_space<vmem>>, vector<1x1x8x8xf32>
    %54 = vector.shape_cast %53 : vector<1x1x8x8xf32> to vector<8x8xf32>
    %55 = vector.shape_cast %52 : vector<8x8xf32> to vector<1x1x8x8xf32>
    tpu.vector_store %arg7[%c0_24, %c1, %c0_25, %c0_26], %55 {strides = array<i32>} : memref<2x4x8x8xf32, #tpu.memory_space<vmem>>, vector<1x1x8x8xf32>,
    %cst_27 = arith.constant dense<0.000000e+00> : vector<8x8xf32>
    %56 = tpu.matmul %52, %40, %cst_27 {dimension_numbers = #tpu.dot_dimension_numbers<[1], [0], [0], [1], [0, 0, 1, 1], [], []>} : vector<8x8xf32>, vector<8x8xf32>, vector<8x8xf32> -> vector<8x8xf32>
    %57 = vector.extract_strided_slice %2 {offsets = [8, 0], sizes = [8, 32], strides = [1, 1]} : vector<32x32xf32> to vector<8x32xf32>
    %cst_28 = arith.constant dense<0.000000e+00> : vector<8x32xf32>
    %58 = tpu.matmul %56, %57, %cst_28 {dimension_numbers = #tpu.dot_dimension_numbers<[1], [0], [0], [1], [0, 0, 1, 1], [], []>} : vector<8x8xf32>, vector<8x32xf32>, vector<8x32xf32> -> vector<8x32xf32>
    %59 = arith.addf %35, %58 : vector<8x32xf32>
    %60 = vector.extract_strided_slice %8 {offsets = [0, 16], sizes = [8, 8], strides = [1, 1]} : vector<16x32xf32> to vector<8x8xf32>
    %cst_29 = arith.constant 0.353553385 : f32
    %61 = vector.broadcast %cst_29 : f32 to vector<8x8xf32>
    %62 = arith.mulf %60, %61 : vector<8x8xf32>
    %63 = vector.extract_strided_slice %9 {offsets = [0, 16], sizes = [8, 8], strides = [1, 1]} : vector<16x32xf32> to vector<8x8xf32>
    %64 = vector.extract_strided_slice %10 {offsets = [0, 16], sizes = [8, 8], strides = [1, 1]} : vector<16x32xf32> to vector<8x8xf32>
    %65 = tpu.transpose %63, [1, 0] : vector<8x8xf32> -> vector<8x8xf32>
    %cst_30 = arith.constant dense<0.000000e+00> : vector<8x8xf32>
    %66 = tpu.matmul %62, %65, %cst_30 {dimension_numbers = #tpu.dot_dimension_numbers<[1], [0], [0], [1], [0, 0, 1, 1], [], []>} : vector<8x8xf32>, vector<8x8xf32>, vector<8x8xf32> -> vector<8x8xf32>
    %cst_31 = arith.constant dense<0xFF800000> : vector<8xf32>
    %67 = vector.multi_reduction <maximumf>, %66, %cst_31 [1] : vector<8x8xf32> to vector<8xf32>
    %68 = vector.shape_cast %67 : vector<8xf32> to vector<8x1xf32>
    %69 = vector.broadcast %68 : vector<8x1xf32> to vector<8x8xf32>
    %70 = arith.subf %66, %69 : vector<8x8xf32>
    %71 = math.exp %70 : vector<8x8xf32>
    %cst_32 = arith.constant dense<0.000000e+00> : vector<8xf32>
    %72 = vector.multi_reduction <add>, %71, %cst_32 [1] : vector<8x8xf32> to vector<8xf32>
    %73 = vector.shape_cast %72 : vector<8xf32> to vector<8x1xf32>
    %74 = tpu.reciprocal %73 {approx = true} : vector<8x1xf32> -> vector<8x1xf32>
    %75 = vector.broadcast %74 : vector<8x1xf32> to vector<8x8xf32>
    %76 = arith.mulf %71, %75 : vector<8x8xf32>
    %c0_33 = arith.constant 0 : index
    %c2 = arith.constant 2 : index
    %c0_34 = arith.constant 0 : index
    %c0_35 = arith.constant 0 : index
    %77 = vector.load %arg7[%c0_33, %c2, %c0_34, %c0_35] : memref<2x4x8x8xf32, #tpu.memory_space<vmem>>, vector<1x1x8x8xf32>
    %78 = vector.shape_cast %77 : vector<1x1x8x8xf32> to vector<8x8xf32>
    %79 = vector.shape_cast %76 : vector<8x8xf32> to vector<1x1x8x8xf32>
    tpu.vector_store %arg7[%c0_33, %c2, %c0_34, %c0_35], %79 {strides = array<i32>} : memref<2x4x8x8xf32, #tpu.memory_space<vmem>>, vector<1x1x8x8xf32>,
    %cst_36 = arith.constant dense<0.000000e+00> : vector<8x8xf32>
    %80 = tpu.matmul %76, %64, %cst_36 {dimension_numbers = #tpu.dot_dimension_numbers<[1], [0], [0], [1], [0, 0, 1, 1], [], []>} : vector<8x8xf32>, vector<8x8xf32>, vector<8x8xf32> -> vector<8x8xf32>
    %81 = vector.extract_strided_slice %2 {offsets = [16, 0], sizes = [8, 32], strides = [1, 1]} : vector<32x32xf32> to vector<8x32xf32>
    %cst_37 = arith.constant dense<0.000000e+00> : vector<8x32xf32>
    %82 = tpu.matmul %80, %81, %cst_37 {dimension_numbers = #tpu.dot_dimension_numbers<[1], [0], [0], [1], [0, 0, 1, 1], [], []>} : vector<8x8xf32>, vector<8x32xf32>, vector<8x32xf32> -> vector<8x32xf32>
    %83 = arith.addf %59, %82 : vector<8x32xf32>
    %84 = vector.extract_strided_slice %8 {offsets = [0, 24], sizes = [8, 8], strides = [1, 1]} : vector<16x32xf32> to vector<8x8xf32>
    %cst_38 = arith.constant 0.353553385 : f32
    %85 = vector.broadcast %cst_38 : f32 to vector<8x8xf32>
    %86 = arith.mulf %84, %85 : vector<8x8xf32>
    %87 = vector.extract_strided_slice %9 {offsets = [0, 24], sizes = [8, 8], strides = [1, 1]} : vector<16x32xf32> to vector<8x8xf32>
    %88 = vector.extract_strided_slice %10 {offsets = [0, 24], sizes = [8, 8], strides = [1, 1]} : vector<16x32xf32> to vector<8x8xf32>
    %89 = tpu.transpose %87, [1, 0] : vector<8x8xf32> -> vector<8x8xf32>
    %cst_39 = arith.constant dense<0.000000e+00> : vector<8x8xf32>
    %90 = tpu.matmul %86, %89, %cst_39 {dimension_numbers = #tpu.dot_dimension_numbers<[1], [0], [0], [1], [0, 0, 1, 1], [], []>} : vector<8x8xf32>, vector<8x8xf32>, vector<8x8xf32> -> vector<8x8xf32>
    %cst_40 = arith.constant dense<0xFF800000> : vector<8xf32>
    %91 = vector.multi_reduction <maximumf>, %90, %cst_40 [1] : vector<8x8xf32> to vector<8xf32>
    %92 = vector.shape_cast %91 : vector<8xf32> to vector<8x1xf32>
    %93 = vector.broadcast %92 : vector<8x1xf32> to vector<8x8xf32>
    %94 = arith.subf %90, %93 : vector<8x8xf32>
    %95 = math.exp %94 : vector<8x8xf32>
    %cst_41 = arith.constant dense<0.000000e+00> : vector<8xf32>
    %96 = vector.multi_reduction <add>, %95, %cst_41 [1] : vector<8x8xf32> to vector<8xf32>
    %97 = vector.shape_cast %96 : vector<8xf32> to vector<8x1xf32>
    %98 = tpu.reciprocal %97 {approx = true} : vector<8x1xf32> -> vector<8x1xf32>
    %99 = vector.broadcast %98 : vector<8x1xf32> to vector<8x8xf32>
    %100 = arith.mulf %95, %99 : vector<8x8xf32>
    %c0_42 = arith.constant 0 : index
    %c3 = arith.constant 3 : index
    %c0_43 = arith.constant 0 : index
    %c0_44 = arith.constant 0 : index
    %101 = vector.load %arg7[%c0_42, %c3, %c0_43, %c0_44] : memref<2x4x8x8xf32, #tpu.memory_space<vmem>>, vector<1x1x8x8xf32>
    %102 = vector.shape_cast %101 : vector<1x1x8x8xf32> to vector<8x8xf32>
    %103 = vector.shape_cast %100 : vector<8x8xf32> to vector<1x1x8x8xf32>
    tpu.vector_store %arg7[%c0_42, %c3, %c0_43, %c0_44], %103 {strides = array<i32>} : memref<2x4x8x8xf32, #tpu.memory_space<vmem>>, vector<1x1x8x8xf32>,
    %cst_45 = arith.constant dense<0.000000e+00> : vector<8x8xf32>
    %104 = tpu.matmul %100, %88, %cst_45 {dimension_numbers = #tpu.dot_dimension_numbers<[1], [0], [0], [1], [0, 0, 1, 1], [], []>} : vector<8x8xf32>, vector<8x8xf32>, vector<8x8xf32> -> vector<8x8xf32>
    %105 = vector.extract_strided_slice %2 {offsets = [24, 0], sizes = [8, 32], strides = [1, 1]} : vector<32x32xf32> to vector<8x32xf32>
    %cst_46 = arith.constant dense<0.000000e+00> : vector<8x32xf32>
    %106 = tpu.matmul %104, %105, %cst_46 {dimension_numbers = #tpu.dot_dimension_numbers<[1], [0], [0], [1], [0, 0, 1, 1], [], []>} : vector<8x8xf32>, vector<8x32xf32>, vector<8x32xf32> -> vector<8x32xf32>
    %107 = arith.addf %83, %106 : vector<8x32xf32>
    %108 = vector.broadcast %3 : vector<1x32xf32> to vector<8x32xf32>
    %109 = arith.addf %107, %108 : vector<8x32xf32>
    %c0_47 = arith.constant 0 : index
    %c0_48 = arith.constant 0 : index
    %110 = vector.load %arg6[%c0_47, %c0_48] : memref<16x32xf32, #tpu.memory_space<vmem>>, vector<8x32xf32>
    tpu.vector_store %arg6[%c0_47, %c0_48], %109 {strides = array<i32>} : memref<16x32xf32, #tpu.memory_space<vmem>>, vector<8x32xf32>,
    %cst_49 = arith.constant 0.000000e+00 : f32
    %111 = vector.broadcast %cst_49 : f32 to vector<8x32xf32>
    %112 = vector.extract_strided_slice %8 {offsets = [8, 0], sizes = [8, 8], strides = [1, 1]} : vector<16x32xf32> to vector<8x8xf32>
    %cst_50 = arith.constant 0.353553385 : f32
    %113 = vector.broadcast %cst_50 : f32 to vector<8x8xf32>
    %114 = arith.mulf %112, %113 : vector<8x8xf32>
    %115 = vector.extract_strided_slice %9 {offsets = [8, 0], sizes = [8, 8], strides = [1, 1]} : vector<16x32xf32> to vector<8x8xf32>
    %116 = vector.extract_strided_slice %10 {offsets = [8, 0], sizes = [8, 8], strides = [1, 1]} : vector<16x32xf32> to vector<8x8xf32>
    %117 = tpu.transpose %115, [1, 0] : vector<8x8xf32> -> vector<8x8xf32>
    %cst_51 = arith.constant dense<0.000000e+00> : vector<8x8xf32>
    %118 = tpu.matmul %114, %117, %cst_51 {dimension_numbers = #tpu.dot_dimension_numbers<[1], [0], [0], [1], [0, 0, 1, 1], [], []>} : vector<8x8xf32>, vector<8x8xf32>, vector<8x8xf32> -> vector<8x8xf32>
    %cst_52 = arith.constant dense<0xFF800000> : vector<8xf32>
    %119 = vector.multi_reduction <maximumf>, %118, %cst_52 [1] : vector<8x8xf32> to vector<8xf32>
    %120 = vector.shape_cast %119 : vector<8xf32> to vector<8x1xf32>
    %121 = vector.broadcast %120 : vector<8x1xf32> to vector<8x8xf32>
    %122 = arith.subf %118, %121 : vector<8x8xf32>
    %123 = math.exp %122 : vector<8x8xf32>
    %cst_53 = arith.constant dense<0.000000e+00> : vector<8xf32>
    %124 = vector.multi_reduction <add>, %123, %cst_53 [1] : vector<8x8xf32> to vector<8xf32>
    %125 = vector.shape_cast %124 : vector<8xf32> to vector<8x1xf32>
    %126 = tpu.reciprocal %125 {approx = true} : vector<8x1xf32> -> vector<8x1xf32>
    %127 = vector.broadcast %126 : vector<8x1xf32> to vector<8x8xf32>
    %128 = arith.mulf %123, %127 : vector<8x8xf32>
    %c1_54 = arith.constant 1 : index
    %c0_55 = arith.constant 0 : index
    %c0_56 = arith.constant 0 : index
    %c0_57 = arith.constant 0 : index
    %129 = vector.load %arg7[%c1_54, %c0_55, %c0_56, %c0_57] : memref<2x4x8x8xf32, #tpu.memory_space<vmem>>, vector<1x1x8x8xf32>
    %130 = vector.shape_cast %129 : vector<1x1x8x8xf32> to vector<8x8xf32>
    %131 = vector.shape_cast %128 : vector<8x8xf32> to vector<1x1x8x8xf32>
    tpu.vector_store %arg7[%c1_54, %c0_55, %c0_56, %c0_57], %131 {strides = array<i32>} : memref<2x4x8x8xf32, #tpu.memory_space<vmem>>, vector<1x1x8x8xf32>,
    %cst_58 = arith.constant dense<0.000000e+00> : vector<8x8xf32>
    %132 = tpu.matmul %128, %116, %cst_58 {dimension_numbers = #tpu.dot_dimension_numbers<[1], [0], [0], [1], [0, 0, 1, 1], [], []>} : vector<8x8xf32>, vector<8x8xf32>, vector<8x8xf32> -> vector<8x8xf32>
    %133 = vector.extract_strided_slice %2 {offsets = [0, 0], sizes = [8, 32], strides = [1, 1]} : vector<32x32xf32> to vector<8x32xf32>
    %cst_59 = arith.constant dense<0.000000e+00> : vector<8x32xf32>
    %134 = tpu.matmul %132, %133, %cst_59 {dimension_numbers = #tpu.dot_dimension_numbers<[1], [0], [0], [1], [0, 0, 1, 1], [], []>} : vector<8x8xf32>, vector<8x32xf32>, vector<8x32xf32> -> vector<8x32xf32>
    %135 = arith.addf %111, %134 : vector<8x32xf32>
    %136 = vector.extract_strided_slice %8 {offsets = [8, 8], sizes = [8, 8], strides = [1, 1]} : vector<16x32xf32> to vector<8x8xf32>
    %cst_60 = arith.constant 0.353553385 : f32
    %137 = vector.broadcast %cst_60 : f32 to vector<8x8xf32>
    %138 = arith.mulf %136, %137 : vector<8x8xf32>
    %139 = vector.extract_strided_slice %9 {offsets = [8, 8], sizes = [8, 8], strides = [1, 1]} : vector<16x32xf32> to vector<8x8xf32>
    %140 = vector.extract_strided_slice %10 {offsets = [8, 8], sizes = [8, 8], strides = [1, 1]} : vector<16x32xf32> to vector<8x8xf32>
    %141 = tpu.transpose %139, [1, 0] : vector<8x8xf32> -> vector<8x8xf32>
    %cst_61 = arith.constant dense<0.000000e+00> : vector<8x8xf32>
    %142 = tpu.matmul %138, %141, %cst_61 {dimension_numbers = #tpu.dot_dimension_numbers<[1], [0], [0], [1], [0, 0, 1, 1], [], []>} : vector<8x8xf32>, vector<8x8xf32>, vector<8x8xf32> -> vector<8x8xf32>
    %cst_62 = arith.constant dense<0xFF800000> : vector<8xf32>
    %143 = vector.multi_reduction <maximumf>, %142, %cst_62 [1] : vector<8x8xf32> to vector<8xf32>
    %144 = vector.shape_cast %143 : vector<8xf32> to vector<8x1xf32>
    %145 = vector.broadcast %144 : vector<8x1xf32> to vector<8x8xf32>
    %146 = arith.subf %142, %145 : vector<8x8xf32>
    %147 = math.exp %146 : vector<8x8xf32>
    %cst_63 = arith.constant dense<0.000000e+00> : vector<8xf32>
    %148 = vector.multi_reduction <add>, %147, %cst_63 [1] : vector<8x8xf32> to vector<8xf32>
    %149 = vector.shape_cast %148 : vector<8xf32> to vector<8x1xf32>
    %150 = tpu.reciprocal %149 {approx = true} : vector<8x1xf32> -> vector<8x1xf32>
    %151 = vector.broadcast %150 : vector<8x1xf32> to vector<8x8xf32>
    %152 = arith.mulf %147, %151 : vector<8x8xf32>
    %c1_64 = arith.constant 1 : index
    %c1_65 = arith.constant 1 : index
    %c0_66 = arith.constant 0 : index
    %c0_67 = arith.constant 0 : index
    %153 = vector.load %arg7[%c1_64, %c1_65, %c0_66, %c0_67] : memref<2x4x8x8xf32, #tpu.memory_space<vmem>>, vector<1x1x8x8xf32>
    %154 = vector.shape_cast %153 : vector<1x1x8x8xf32> to vector<8x8xf32>
    %155 = vector.shape_cast %152 : vector<8x8xf32> to vector<1x1x8x8xf32>
    tpu.vector_store %arg7[%c1_64, %c1_65, %c0_66, %c0_67], %155 {strides = array<i32>} : memref<2x4x8x8xf32, #tpu.memory_space<vmem>>, vector<1x1x8x8xf32>,
    %cst_68 = arith.constant dense<0.000000e+00> : vector<8x8xf32>
    %156 = tpu.matmul %152, %140, %cst_68 {dimension_numbers = #tpu.dot_dimension_numbers<[1], [0], [0], [1], [0, 0, 1, 1], [], []>} : vector<8x8xf32>, vector<8x8xf32>, vector<8x8xf32> -> vector<8x8xf32>
    %157 = vector.extract_strided_slice %2 {offsets = [8, 0], sizes = [8, 32], strides = [1, 1]} : vector<32x32xf32> to vector<8x32xf32>
    %cst_69 = arith.constant dense<0.000000e+00> : vector<8x32xf32>
    %158 = tpu.matmul %156, %157, %cst_69 {dimension_numbers = #tpu.dot_dimension_numbers<[1], [0], [0], [1], [0, 0, 1, 1], [], []>} : vector<8x8xf32>, vector<8x32xf32>, vector<8x32xf32> -> vector<8x32xf32>
    %159 = arith.addf %135, %158 : vector<8x32xf32>
    %160 = vector.extract_strided_slice %8 {offsets = [8, 16], sizes = [8, 8], strides = [1, 1]} : vector<16x32xf32> to vector<8x8xf32>
    %cst_70 = arith.constant 0.353553385 : f32
    %161 = vector.broadcast %cst_70 : f32 to vector<8x8xf32>
    %162 = arith.mulf %160, %161 : vector<8x8xf32>
    %163 = vector.extract_strided_slice %9 {offsets = [8, 16], sizes = [8, 8], strides = [1, 1]} : vector<16x32xf32> to vector<8x8xf32>
    %164 = vector.extract_strided_slice %10 {offsets = [8, 16], sizes = [8, 8], strides = [1, 1]} : vector<16x32xf32> to vector<8x8xf32>
    %165 = tpu.transpose %163, [1, 0] : vector<8x8xf32> -> vector<8x8xf32>
    %cst_71 = arith.constant dense<0.000000e+00> : vector<8x8xf32>
    %166 = tpu.matmul %162, %165, %cst_71 {dimension_numbers = #tpu.dot_dimension_numbers<[1], [0], [0], [1], [0, 0, 1, 1], [], []>} : vector<8x8xf32>, vector<8x8xf32>, vector<8x8xf32> -> vector<8x8xf32>
    %cst_72 = arith.constant dense<0xFF800000> : vector<8xf32>
    %167 = vector.multi_reduction <maximumf>, %166, %cst_72 [1] : vector<8x8xf32> to vector<8xf32>
    %168 = vector.shape_cast %167 : vector<8xf32> to vector<8x1xf32>
    %169 = vector.broadcast %168 : vector<8x1xf32> to vector<8x8xf32>
    %170 = arith.subf %166, %169 : vector<8x8xf32>
    %171 = math.exp %170 : vector<8x8xf32>
    %cst_73 = arith.constant dense<0.000000e+00> : vector<8xf32>
    %172 = vector.multi_reduction <add>, %171, %cst_73 [1] : vector<8x8xf32> to vector<8xf32>
    %173 = vector.shape_cast %172 : vector<8xf32> to vector<8x1xf32>
    %174 = tpu.reciprocal %173 {approx = true} : vector<8x1xf32> -> vector<8x1xf32>
    %175 = vector.broadcast %174 : vector<8x1xf32> to vector<8x8xf32>
    %176 = arith.mulf %171, %175 : vector<8x8xf32>
    %c1_74 = arith.constant 1 : index
    %c2_75 = arith.constant 2 : index
    %c0_76 = arith.constant 0 : index
    %c0_77 = arith.constant 0 : index
    %177 = vector.load %arg7[%c1_74, %c2_75, %c0_76, %c0_77] : memref<2x4x8x8xf32, #tpu.memory_space<vmem>>, vector<1x1x8x8xf32>
    %178 = vector.shape_cast %177 : vector<1x1x8x8xf32> to vector<8x8xf32>
    %179 = vector.shape_cast %176 : vector<8x8xf32> to vector<1x1x8x8xf32>
    tpu.vector_store %arg7[%c1_74, %c2_75, %c0_76, %c0_77], %179 {strides = array<i32>} : memref<2x4x8x8xf32, #tpu.memory_space<vmem>>, vector<1x1x8x8xf32>,
    %cst_78 = arith.constant dense<0.000000e+00> : vector<8x8xf32>
    %180 = tpu.matmul %176, %164, %cst_78 {dimension_numbers = #tpu.dot_dimension_numbers<[1], [0], [0], [1], [0, 0, 1, 1], [], []>} : vector<8x8xf32>, vector<8x8xf32>, vector<8x8xf32> -> vector<8x8xf32>
    %181 = vector.extract_strided_slice %2 {offsets = [16, 0], sizes = [8, 32], strides = [1, 1]} : vector<32x32xf32> to vector<8x32xf32>
    %cst_79 = arith.constant dense<0.000000e+00> : vector<8x32xf32>
    %182 = tpu.matmul %180, %181, %cst_79 {dimension_numbers = #tpu.dot_dimension_numbers<[1], [0], [0], [1], [0, 0, 1, 1], [], []>} : vector<8x8xf32>, vector<8x32xf32>, vector<8x32xf32> -> vector<8x32xf32>
    %183 = arith.addf %159, %182 : vector<8x32xf32>
    %184 = vector.extract_strided_slice %8 {offsets = [8, 24], sizes = [8, 8], strides = [1, 1]} : vector<16x32xf32> to vector<8x8xf32>
    %cst_80 = arith.constant 0.353553385 : f32
    %185 = vector.broadcast %cst_80 : f32 to vector<8x8xf32>
    %186 = arith.mulf %184, %185 : vector<8x8xf32>
    %187 = vector.extract_strided_slice %9 {offsets = [8, 24], sizes = [8, 8], strides = [1, 1]} : vector<16x32xf32> to vector<8x8xf32>
    %188 = vector.extract_strided_slice %10 {offsets = [8, 24], sizes = [8, 8], strides = [1, 1]} : vector<16x32xf32> to vector<8x8xf32>
    %189 = tpu.transpose %187, [1, 0] : vector<8x8xf32> -> vector<8x8xf32>
    %cst_81 = arith.constant dense<0.000000e+00> : vector<8x8xf32>
    %190 = tpu.matmul %186, %189, %cst_81 {dimension_numbers = #tpu.dot_dimension_numbers<[1], [0], [0], [1], [0, 0, 1, 1], [], []>} : vector<8x8xf32>, vector<8x8xf32>, vector<8x8xf32> -> vector<8x8xf32>
    %cst_82 = arith.constant dense<0xFF800000> : vector<8xf32>
    %191 = vector.multi_reduction <maximumf>, %190, %cst_82 [1] : vector<8x8xf32> to vector<8xf32>
    %192 = vector.shape_cast %191 : vector<8xf32> to vector<8x1xf32>
    %193 = vector.broadcast %192 : vector<8x1xf32> to vector<8x8xf32>
    %194 = arith.subf %190, %193 : vector<8x8xf32>
    %195 = math.exp %194 : vector<8x8xf32>
    %cst_83 = arith.constant dense<0.000000e+00> : vector<8xf32>
    %196 = vector.multi_reduction <add>, %195, %cst_83 [1] : vector<8x8xf32> to vector<8xf32>
    %197 = vector.shape_cast %196 : vector<8xf32> to vector<8x1xf32>
    %198 = tpu.reciprocal %197 {approx = true} : vector<8x1xf32> -> vector<8x1xf32>
    %199 = vector.broadcast %198 : vector<8x1xf32> to vector<8x8xf32>
    %200 = arith.mulf %195, %199 : vector<8x8xf32>
    %c1_84 = arith.constant 1 : index
    %c3_85 = arith.constant 3 : index
    %c0_86 = arith.constant 0 : index
    %c0_87 = arith.constant 0 : index
    %201 = vector.load %arg7[%c1_84, %c3_85, %c0_86, %c0_87] : memref<2x4x8x8xf32, #tpu.memory_space<vmem>>, vector<1x1x8x8xf32>
    %202 = vector.shape_cast %201 : vector<1x1x8x8xf32> to vector<8x8xf32>
    %203 = vector.shape_cast %200 : vector<8x8xf32> to vector<1x1x8x8xf32>
    tpu.vector_store %arg7[%c1_84, %c3_85, %c0_86, %c0_87], %203 {strides = array<i32>} : memref<2x4x8x8xf32, #tpu.memory_space<vmem>>, vector<1x1x8x8xf32>,
    %cst_88 = arith.constant dense<0.000000e+00> : vector<8x8xf32>
    %204 = tpu.matmul %200, %188, %cst_88 {dimension_numbers = #tpu.dot_dimension_numbers<[1], [0], [0], [1], [0, 0, 1, 1], [], []>} : vector<8x8xf32>, vector<8x8xf32>, vector<8x8xf32> -> vector<8x8xf32>
    %205 = vector.extract_strided_slice %2 {offsets = [24, 0], sizes = [8, 32], strides = [1, 1]} : vector<32x32xf32> to vector<8x32xf32>
    %cst_89 = arith.constant dense<0.000000e+00> : vector<8x32xf32>
    %206 = tpu.matmul %204, %205, %cst_89 {dimension_numbers = #tpu.dot_dimension_numbers<[1], [0], [0], [1], [0, 0, 1, 1], [], []>} : vector<8x8xf32>, vector<8x32xf32>, vector<8x32xf32> -> vector<8x32xf32>
    %207 = arith.addf %183, %206 : vector<8x32xf32>
    %208 = vector.broadcast %3 : vector<1x32xf32> to vector<8x32xf32>
    %209 = arith.addf %207, %208 : vector<8x32xf32>
    %c8 = arith.constant 8 : index
    %c0_90 = arith.constant 0 : index
    %210 = vector.load %arg6[%c8, %c0_90] : memref<16x32xf32, #tpu.memory_space<vmem>>, vector<8x32xf32>
    tpu.vector_store %arg6[%c8, %c0_90], %209 {strides = array<i32>} : memref<16x32xf32, #tpu.memory_space<vmem>>, vector<8x32xf32>,
    return
  }
  func.func @transform_0(%arg0: i32) -> (i32, i32) {
    %c0_i32 = arith.constant 0 : i32
    %c0_i32_0 = arith.constant 0 : i32
    return %arg0, %c0_i32 : i32, i32
  }
  func.func @transform_1(%arg0: i32) -> (i32, i32) {
    %c0_i32 = arith.constant 0 : i32
    %c0_i32_0 = arith.constant 0 : i32
    %c0_i32_1 = arith.constant 0 : i32
    return %c0_i32, %c0_i32_0 : i32, i32
  }
  func.func @transform_2(%arg0: i32) -> (i32, i32) {
    %c0_i32 = arith.constant 0 : i32
    %c0_i32_0 = arith.constant 0 : i32
    %c0_i32_1 = arith.constant 0 : i32
    return %c0_i32, %c0_i32_0 : i32, i32
  }
  func.func @transform_3(%arg0: i32) -> (i32, i32) {
    %c0_i32 = arith.constant 0 : i32
    %c0_i32_0 = arith.constant 0 : i32
    %c0_i32_1 = arith.constant 0 : i32
    return %c0_i32, %c0_i32_0 : i32, i32
  }
  func.func @transform_4(%arg0: i32) -> (i32, i32) {
    %c0_i32 = arith.constant 0 : i32
    %c0_i32_0 = arith.constant 0 : i32
    %c0_i32_1 = arith.constant 0 : i32
    return %c0_i32, %c0_i32_0 : i32, i32
  }
  func.func @transform_5(%arg0: i32) -> (i32, i32) {
    %c0_i32 = arith.constant 0 : i32
    %c0_i32_0 = arith.constant 0 : i32
    return %arg0, %c0_i32 : i32, i32
  }
  func.func @transform_6(%arg0: i32) -> (i32, i32, i32, i32) {
    %c0_i32 = arith.constant 0 : i32
    %c0_i32_0 = arith.constant 0 : i32
    %c0_i32_1 = arith.constant 0 : i32
    %c0_i32_2 = arith.constant 0 : i32
    return %arg0, %c0_i32, %c0_i32_0, %c0_i32_1 : i32, i32, i32, i32
  }
}

</mosaic_0001>

<llo_original>
// kernel: tpu_custom_call.1
$region0: #{tpu_custom_call.1}
  #allocation0 [shape = 'u32[]', space=smem, size = 0x4, offset = 0x4, fixed_abs, tag = 'smem constant byte address 0x4 - core index']
  #allocation1 [shape = 'u32[72,128]{1,0:T(1,128)}', space=vmem, size = 0x9000, scoped, tag = 'internal scratch']
  %s0 = inlined_call_operand.hbm [shape: f32[16,32], index: 0, kind: input, shape index: {}]
  %s1 = inlined_call_operand.hbm [shape: f32[32,96], index: 1, kind: input, shape index: {}]
  %s2 = inlined_call_operand.vmem [shape: f32[1,96], index: 2, kind: input, shape index: {}]
  %s3 = inlined_call_operand.hbm [shape: f32[32,32], index: 3, kind: input, shape index: {}]
  %s4 = inlined_call_operand.vmem [shape: f32[1,32], index: 4, kind: input, shape index: {}]
  %s5 = inlined_call_operand.hbm [shape: f32[16,32], index: 5, kind: output, shape index: {0}]
  %s6 = inlined_call_operand.hbm [shape: f32[2,4,8,8], index: 6, kind: output, shape index: {1}]
  %7 = xla_tuple %s5, %s6
  %s8 = sld [smem:[#allocation0]]
  $region50: #{tpu_custom_call.1} parent=0
    _
  %s10 = ssub.s32 1, %s8
  %s11 = scalar_select 0, %s10, %s8
  $region1: #{tpu_custom_call.1} parent=0
    #allocation2 [shape = 'u8[8192]{0}', space=vmem, size = 0x2000, scoped, tag = 'input window, operand 0, single buffered']
    #allocation3 [shape = 's32[1]{0}', space=sflag, size = 0x4, scoped, tag = 'scoped memory for tpu_custom_call.1']
    #allocation4 [shape = 's32[1]{0}', space=sflag, size = 0x4, scoped, tag = 'scoped memory for tpu_custom_call.1']
    #allocation5 [shape = 'u8[16384]{0}', space=vmem, size = 0x4000, scoped, tag = 'input window, operand 1, single buffered']
    #allocation6 [shape = 's32[1]{0}', space=sflag, size = 0x4, scoped, tag = 'scoped memory for tpu_custom_call.1']
    #allocation7 [shape = 'u8[16384]{0}', space=vmem, size = 0x4000, scoped, tag = 'input window, operand 3, single buffered']
    #allocation8 [shape = 'u8[8192]{0}', space=vmem, size = 0x2000, scoped, tag = 'output window, operand 0, single buffered']
    #allocation9 [shape = 'u8[32768]{0}', space=vmem, size = 0x8000, scoped, tag = 'output window, operand 1, single buffered']
    #allocation10 [shape = 's32[1]{0}', space=sflag, size = 0x4, scoped, tag = 'scoped memory for tpu_custom_call.1']
    %12 = vsyncpa [#allocation3], 0
    %13 = vsyncpa [#allocation6], 0
    %14 = vsyncpa [#allocation4], 0
    %15 = vsyncpa [#allocation10], 0
    // Predicated region
    $region2: #{tpu_custom_call.1} parent=1 // pred_check
      _
    $region3: #{tpu_custom_call.1} parent=1 // pred_check_branch
      %17 = sbr.rel (0) target = $region5
    $region4: #{tpu_custom_call.1} parent=1 // pred_region
      %19 = vsyncadd [#allocation3], 0
      %s20 = sshll.u32 %s0, 4
      %s21 = int_to_ptr.hbm [resolvable:$true] %s20
      %s22 = sshll.u32 [#allocation2], 4
      %s23 = int_to_ptr.vmem [resolvable:$true] %s22
      %28 = dma.hbm_to_vmem [thread:$0]  %s21, 256, %s23, [#allocation3], 128, 128, 8
    $region5: #{tpu_custom_call.1} parent=1 // pred_fallthru
      _
    // Predicated region
    $region6: #{tpu_custom_call.1} parent=1 // pred_check
      _
    $region7: #{tpu_custom_call.1} parent=1 // pred_check_branch
      %30 = sbr.rel (0) target = $region9
    $region8: #{tpu_custom_call.1} parent=1 // pred_region
      %32 = vsyncadd [#allocation6], 0
      %s33 = sshll.u32 %s1, 4
      %s34 = int_to_ptr.hbm [resolvable:$true] %s33
      %s35 = sshll.u32 [#allocation5], 4
      %s36 = int_to_ptr.vmem [resolvable:$true] %s35
      %41 = dma.hbm_to_vmem [thread:$0]  %s34, 512, %s36, [#allocation6], 128, 128, 8
    $region9: #{tpu_custom_call.1} parent=1 // pred_fallthru
      _
    // Predicated region
    $region10: #{tpu_custom_call.1} parent=1 // pred_check
      _
    $region11: #{tpu_custom_call.1} parent=1 // pred_check_branch
      %43 = sbr.rel (0) target = $region13
    $region12: #{tpu_custom_call.1} parent=1 // pred_region
      _
    $region13: #{tpu_custom_call.1} parent=1 // pred_fallthru
      _
    // Predicated region
    $region14: #{tpu_custom_call.1} parent=1 // pred_check
      _
    $region15: #{tpu_custom_call.1} parent=1 // pred_check_branch
      %45 = sbr.rel (0) target = $region17
    $region16: #{tpu_custom_call.1} parent=1 // pred_region
      %47 = vsyncadd [#allocation6], 0
      %s48 = sshll.u32 %s3, 4
      %s49 = int_to_ptr.hbm [resolvable:$true] %s48
      %s50 = sshll.u32 [#allocation7], 4
      %s51 = int_to_ptr.vmem [resolvable:$true] %s50
      %56 = dma.hbm_to_vmem [thread:$0]  %s49, 512, %s51, [#allocation6], 128, 128, 8
    $region17: #{tpu_custom_call.1} parent=1 // pred_fallthru
      _
    // Predicated region
    $region18: #{tpu_custom_call.1} parent=1 // pred_check
      _
    $region19: #{tpu_custom_call.1} parent=1 // pred_check_branch
      %58 = sbr.rel (0) target = $region21
    $region20: #{tpu_custom_call.1} parent=1 // pred_region
      _
    $region21: #{tpu_custom_call.1} parent=1 // pred_fallthru
      _
    // Predicated region
    $region22: #{tpu_custom_call.1} parent=1 // pred_check
      _
    $region23: #{tpu_custom_call.1} parent=1 // pred_check_branch
      %60 = sbr.rel (0) target = $region25
    $region24: #{tpu_custom_call.1} parent=1 // pred_region
      %62 = dma.done [#allocation3], 256
    $region25: #{tpu_custom_call.1} parent=1 // pred_fallthru
      _
    // Predicated region
    $region26: #{tpu_custom_call.1} parent=1 // pred_check
      _
    $region27: #{tpu_custom_call.1} parent=1 // pred_check_branch
      %64 = sbr.rel (0) target = $region29
    $region28: #{tpu_custom_call.1} parent=1 // pred_region
      %66 = dma.done [#allocation6], 512
    $region29: #{tpu_custom_call.1} parent=1 // pred_fallthru
      _
    // Predicated region
    $region30: #{tpu_custom_call.1} parent=1 // pred_check
      _
    $region31: #{tpu_custom_call.1} parent=1 // pred_check_branch
      %68 = sbr.rel (0) target = $region33
    $region32: #{tpu_custom_call.1} parent=1 // pred_region
      %70 = dma.done [#allocation6], 512
    $region33: #{tpu_custom_call.1} parent=1 // pred_fallthru
      _
    %v71 = vld [vmem:[#allocation5] sm:$0xff]
    %v72 = vld [vmem:[#allocation5 + $0x8] sm:$0xff]
    %v73 = vld [vmem:[#allocation5 + $0x10] sm:$0xff]
    %v74 = vld [vmem:[#allocation5 + $0x18] sm:$0xff]
    %v75 = vld [vmem:[%s2] sm:$0x1]
    %v76 = vld [vmem:[#allocation7] sm:$0xff]
    %v77 = vld [vmem:[#allocation7 + $0x8] sm:$0xff]
    %v78 = vld [vmem:[#allocation7 + $0x10] sm:$0xff]
    %v79 = vld [vmem:[#allocation7 + $0x18] sm:$0xff]
    %v80 = vld [vmem:[%s4] sm:$0x1]
    %v81 = vld [vmem:[#allocation2] sm:$0xff]
    %v82 = vld [vmem:[#allocation2 + $0x8] sm:$0xff]
    %v84 = vperm.slane %v75, 0
    %vm86 = vcmask 261120
    %v88 = vsel %vm86, %v81, 0
    %v91 = vsel %vm86, %v82, 0
    %93 = vmatpush.msra.mxu0 0.0
    %94 = vmatpush.msra.mxu0 0.0
    %95 = vmatpush.msra.mxu0 0.0
    %96 = vmatpush.msra.mxu0 0.0
    %97 = vmatpush.msra.mxu0 0.0
    %98 = vmatpush.msra.mxu0 0.0
    %99 = vmatpush.msra.mxu0 0.0
    %100 = vmatpush.msra.mxu0 0.0
    %101 = vmatpush.msra.mxu0 0.0
    %102 = vmatpush.msra.mxu0 0.0
    %103 = vmatpush.msra.mxu0 0.0
    %104 = vmatpush.msra.mxu0 0.0
    %105 = vmatpush.msra.mxu0 %v74
    %106 = vmatpush.msra.mxu0 %v73
    %107 = vmatpush.msra.mxu0 %v72
    %108 = vmatpush.msra.mxu0 %v71
    %109 = vmatmul.f32.gmra.mxu0 %v88
    %v110 = vpop.f32.mrf.mxu0
    %v111 = vadd.f32 %v84, %v110
    %112 = vmatmul.f32.gmra.mxu0 %v91
    %v113 = vpop.f32.mrf.mxu0
    %v114 = vadd.f32 %v84, %v113
    %115 = vdwg.mxu0
    %v116 = vmul.f32 %v111, 0.35355338
    %118 = vrot.lane.b32.xlu0 %v111, 96
    %v119 = vpop.permute.xlu0 %118
    %vm120 = vcmask 64512
    %v122 = vsel %vm120, %v116, 0
    %v124 = vsel %vm120, %v119, 0
    %126 = vmatpush.xpose.msra.mxu0 0.0
    %127 = vmatpush.xpose.msra.mxu0 0.0
    %128 = vmatpush.xpose.msra.mxu0 0.0
    %129 = vmatpush.xpose.msra.mxu0 0.0
    %130 = vmatpush.xpose.msra.mxu0 0.0
    %131 = vmatpush.xpose.msra.mxu0 0.0
    %132 = vmatpush.xpose.msra.mxu0 0.0
    %133 = vmatpush.xpose.msra.mxu0 0.0
    %134 = vmatpush.xpose.msra.mxu0 0.0
    %135 = vmatpush.xpose.msra.mxu0 0.0
    %136 = vmatpush.xpose.msra.mxu0 0.0
    %137 = vmatpush.xpose.msra.mxu0 0.0
    %138 = vmatpush.xpose.msra.mxu0 0.0
    %139 = vmatpush.xpose.msra.mxu0 0.0
    %140 = vmatpush.xpose.msra.mxu0 0.0
    %141 = vmatpush.xpose.msra.mxu0 %v124
    %142 = vmatmul.f32.gmra.mxu0 %v122
    %v143 = vpop.f32.mrf.mxu0
    %v144 = vadd.f32 0.0, %v143
    %145 = vdwg.mxu0
    %v146 = vsel %vm120, %v144, -inf
    %147 = vmax.xlane.f32.xlu0 %v146
    %v148 = vpop.xlane.xlu0 %147
    %v149 = vsub.f32 %v144, %v148
    %v150 = vmul.f32 %v149, 1.442695
    %v151 = vpow.pop %v150
    %v152 = vsel %vm120, %v151, 0.0
    %153 = vadd.xlane.f32.xlu0 %v152
    %v154 = vpop.xlane.xlu0 %153
    %v155 = vrcp.pop %v154
    %v156 = vmul.f32 %v151, %v155
    %157 = vst.msk [vmem:[#allocation9] sm:$0xff] %vm120, %v156
    %158 = vrot.lane.b32.xlu0 %v111, 64
    %v159 = vpop.permute.xlu0 %158
    %v162 = vsel %vm120, %v156, 0
    %164 = vmatpush.msra.mxu0 0.0
    %165 = vmatpush.msra.mxu0 0.0
    %166 = vmatpush.msra.mxu0 0.0
    %167 = vmatpush.msra.mxu0 0.0
    %168 = vmatpush.msra.mxu0 0.0
    %169 = vmatpush.msra.mxu0 0.0
    %170 = vmatpush.msra.mxu0 0.0
    %171 = vmatpush.msra.mxu0 0.0
    %172 = vmatpush.msra.mxu0 0.0
    %173 = vmatpush.msra.mxu0 0.0
    %174 = vmatpush.msra.mxu0 0.0
    %175 = vmatpush.msra.mxu0 0.0
    %176 = vmatpush.msra.mxu0 0.0
    %177 = vmatpush.msra.mxu0 0.0
    %178 = vmatpush.msra.mxu0 0.0
    %179 = vmatpush.msra.mxu0 %v159
    %180 = vmatmul.f32.gmra.mxu0 %v162
    %v181 = vpop.f32.mrf.mxu0
    %v182 = vadd.f32 0.0, %v181
    %183 = vdwg.mxu0
    %184 = vrot.lane.b32.xlu0 %v116, 120
    %v185 = vpop.permute.xlu0 %184
    %186 = vrot.lane.b32.xlu0 %v111, 88
    %v187 = vpop.permute.xlu0 %186
    %v188 = vsel %vm120, %v185, 0
    %v190 = vsel %vm120, %v187, 0
    %192 = vmatpush.xpose.msra.mxu0 0.0
    %193 = vmatpush.xpose.msra.mxu0 0.0
    %194 = vmatpush.xpose.msra.mxu0 0.0
    %195 = vmatpush.xpose.msra.mxu0 0.0
    %196 = vmatpush.xpose.msra.mxu0 0.0
    %197 = vmatpush.xpose.msra.mxu0 0.0
    %198 = vmatpush.xpose.msra.mxu0 0.0
    %199 = vmatpush.xpose.msra.mxu0 0.0
    %200 = vmatpush.xpose.msra.mxu0 0.0
    %201 = vmatpush.xpose.msra.mxu0 0.0
    %202 = vmatpush.xpose.msra.mxu0 0.0
    %203 = vmatpush.xpose.msra.mxu0 0.0
    %204 = vmatpush.xpose.msra.mxu0 0.0
    %205 = vmatpush.xpose.msra.mxu0 0.0
    %206 = vmatpush.xpose.msra.mxu0 0.0
    %207 = vmatpush.xpose.msra.mxu0 %v190
    %208 = vmatmul.f32.gmra.mxu0 %v188
    %v209 = vpop.f32.mrf.mxu0
    %v210 = vadd.f32 0.0, %v209
    %211 = vdwg.mxu0
    %v212 = vsel %vm120, %v210, -inf
    %213 = vmax.xlane.f32.xlu0 %v212
    %v214 = vpop.xlane.xlu0 %213
    %v215 = vsub.f32 %v210, %v214
    %v216 = vmul.f32 %v215, 1.442695
    %v217 = vpow.pop %v216
    %v218 = vsel %vm120, %v217, 0.0
    %219 = vadd.xlane.f32.xlu0 %v218
    %v220 = vpop.xlane.xlu0 %219
    %v221 = vrcp.pop %v220
    %v222 = vmul.f32 %v217, %v221
    %s223 = scalar_lea.vmem [#allocation9], 8
    %224 = vst.msk [vmem:[%s223] sm:$0xff] %vm120, %v222
    %225 = vrot.lane.b32.xlu0 %v111, 56
    %v226 = vpop.permute.xlu0 %225
    %v229 = vsel %vm120, %v222, 0
    %231 = vmatpush.msra.mxu0 0.0
    %232 = vmatpush.msra.mxu0 0.0
    %233 = vmatpush.msra.mxu0 0.0
    %234 = vmatpush.msra.mxu0 0.0
    %235 = vmatpush.msra.mxu0 0.0
    %236 = vmatpush.msra.mxu0 0.0
    %237 = vmatpush.msra.mxu0 0.0
    %238 = vmatpush.msra.mxu0 0.0
    %239 = vmatpush.msra.mxu0 0.0
    %240 = vmatpush.msra.mxu0 0.0
    %241 = vmatpush.msra.mxu0 0.0
    %242 = vmatpush.msra.mxu0 0.0
    %243 = vmatpush.msra.mxu0 0.0
    %244 = vmatpush.msra.mxu0 0.0
    %245 = vmatpush.msra.mxu0 0.0
    %246 = vmatpush.msra.mxu0 %v226
    %247 = vmatmul.f32.gmra.mxu0 %v229
    %v248 = vpop.f32.mrf.mxu0
    %v249 = vadd.f32 0.0, %v248
    %250 = vdwg.mxu0
    %v252 = vsel %vm120, %v249, 0
    %254 = vmatpush.msra.mxu0 0.0
    %255 = vmatpush.msra.mxu0 0.0
    %256 = vmatpush.msra.mxu0 0.0
    %257 = vmatpush.msra.mxu0 0.0
    %258 = vmatpush.msra.mxu0 0.0
    %259 = vmatpush.msra.mxu0 0.0
    %260 = vmatpush.msra.mxu0 0.0
    %261 = vmatpush.msra.mxu0 0.0
    %262 = vmatpush.msra.mxu0 0.0
    %263 = vmatpush.msra.mxu0 0.0
    %264 = vmatpush.msra.mxu0 0.0
    %265 = vmatpush.msra.mxu0 0.0
    %266 = vmatpush.msra.mxu0 0.0
    %267 = vmatpush.msra.mxu0 0.0
    %268 = vmatpush.msra.mxu0 0.0
    %269 = vmatpush.msra.mxu0 %v77
    %270 = vmatmul.f32.gmra.mxu0 %v252
    %v271 = vpop.f32.mrf.mxu0
    %v272 = vadd.f32 0.0, %v271
    %273 = vdwg.mxu0
    %v275 = vsel %vm120, %v182, 0
    %277 = vmatpush.msra.mxu0 0.0
    %278 = vmatpush.msra.mxu0 0.0
    %279 = vmatpush.msra.mxu0 0.0
    %280 = vmatpush.msra.mxu0 0.0
    %281 = vmatpush.msra.mxu0 0.0
    %282 = vmatpush.msra.mxu0 0.0
    %283 = vmatpush.msra.mxu0 0.0
    %284 = vmatpush.msra.mxu0 0.0
    %285 = vmatpush.msra.mxu0 0.0
    %286 = vmatpush.msra.mxu0 0.0
    %287 = vmatpush.msra.mxu0 0.0
    %288 = vmatpush.msra.mxu0 0.0
    %289 = vmatpush.msra.mxu0 0.0
    %290 = vmatpush.msra.mxu0 0.0
    %291 = vmatpush.msra.mxu0 0.0
    %292 = vmatpush.msra.mxu0 %v76
    %293 = vmatmul.f32.gmra.mxu0 %v275
    %v294 = vpop.f32.mrf.mxu0
    %v295 = vadd.f32 %v272, %v294
    %296 = vdwg.mxu0
    %297 = vrot.lane.b32.xlu0 %v116, 112
    %v298 = vpop.permute.xlu0 %297
    %299 = vrot.lane.b32.xlu0 %v111, 80
    %v300 = vpop.permute.xlu0 %299
    %v301 = vsel %vm120, %v298, 0
    %v303 = vsel %vm120, %v300, 0
    %305 = vmatpush.xpose.msra.mxu0 0.0
    %306 = vmatpush.xpose.msra.mxu0 0.0
    %307 = vmatpush.xpose.msra.mxu0 0.0
    %308 = vmatpush.xpose.msra.mxu0 0.0
    %309 = vmatpush.xpose.msra.mxu0 0.0
    %310 = vmatpush.xpose.msra.mxu0 0.0
    %311 = vmatpush.xpose.msra.mxu0 0.0
    %312 = vmatpush.xpose.msra.mxu0 0.0
    %313 = vmatpush.xpose.msra.mxu0 0.0
    %314 = vmatpush.xpose.msra.mxu0 0.0
    %315 = vmatpush.xpose.msra.mxu0 0.0
    %316 = vmatpush.xpose.msra.mxu0 0.0
    %317 = vmatpush.xpose.msra.mxu0 0.0
    %318 = vmatpush.xpose.msra.mxu0 0.0
    %319 = vmatpush.xpose.msra.mxu0 0.0
    %320 = vmatpush.xpose.msra.mxu0 %v303
    %321 = vmatmul.f32.gmra.mxu0 %v301
    %v322 = vpop.f32.mrf.mxu0
    %v323 = vadd.f32 0.0, %v322
    %324 = vdwg.mxu0
    %v325 = vsel %vm120, %v323, -inf
    %326 = vmax.xlane.f32.xlu0 %v325
    %v327 = vpop.xlane.xlu0 %326
    %v328 = vsub.f32 %v323, %v327
    %v329 = vmul.f32 %v328, 1.442695
    %v330 = vpow.pop %v329
    %v331 = vsel %vm120, %v330, 0.0
    %332 = vadd.xlane.f32.xlu0 %v331
    %v333 = vpop.xlane.xlu0 %332
    %v334 = vrcp.pop %v333
    %v335 = vmul.f32 %v330, %v334
    %s336 = scalar_lea.vmem [#allocation9], 16
    %337 = vst.msk [vmem:[%s336] sm:$0xff] %vm120, %v335
    %338 = vrot.lane.b32.xlu0 %v111, 48
    %v339 = vpop.permute.xlu0 %338
    %v342 = vsel %vm120, %v335, 0
    %344 = vmatpush.msra.mxu0 0.0
    %345 = vmatpush.msra.mxu0 0.0
    %346 = vmatpush.msra.mxu0 0.0
    %347 = vmatpush.msra.mxu0 0.0
    %348 = vmatpush.msra.mxu0 0.0
    %349 = vmatpush.msra.mxu0 0.0
    %350 = vmatpush.msra.mxu0 0.0
    %351 = vmatpush.msra.mxu0 0.0
    %352 = vmatpush.msra.mxu0 0.0
    %353 = vmatpush.msra.mxu0 0.0
    %354 = vmatpush.msra.mxu0 0.0
    %355 = vmatpush.msra.mxu0 0.0
    %356 = vmatpush.msra.mxu0 0.0
    %357 = vmatpush.msra.mxu0 0.0
    %358 = vmatpush.msra.mxu0 0.0
    %359 = vmatpush.msra.mxu0 %v339
    %360 = vmatmul.f32.gmra.mxu0 %v342
    %v361 = vpop.f32.mrf.mxu0
    %v362 = vadd.f32 0.0, %v361
    %363 = vdwg.mxu0
    %v365 = vsel %vm120, %v362, 0
    %367 = vmatpush.msra.mxu0 0.0
    %368 = vmatpush.msra.mxu0 0.0
    %369 = vmatpush.msra.mxu0 0.0
    %370 = vmatpush.msra.mxu0 0.0
    %371 = vmatpush.msra.mxu0 0.0
    %372 = vmatpush.msra.mxu0 0.0
    %373 = vmatpush.msra.mxu0 0.0
    %374 = vmatpush.msra.mxu0 0.0
    %375 = vmatpush.msra.mxu0 0.0
    %376 = vmatpush.msra.mxu0 0.0
    %377 = vmatpush.msra.mxu0 0.0
    %378 = vmatpush.msra.mxu0 0.0
    %379 = vmatpush.msra.mxu0 0.0
    %380 = vmatpush.msra.mxu0 0.0
    %381 = vmatpush.msra.mxu0 0.0
    %382 = vmatpush.msra.mxu0 %v78
    %383 = vmatmul.f32.gmra.mxu0 %v365
    %v384 = vpop.f32.mrf.mxu0
    %v385 = vadd.f32 0.0, %v384
    %386 = vdwg.mxu0
    %v387 = vadd.f32 %v295, %v385
    %388 = vrot.lane.b32.xlu0 %v116, 104
    %v389 = vpop.permute.xlu0 %388
    %390 = vrot.lane.b32.xlu0 %v111, 72
    %v391 = vpop.permute.xlu0 %390
    %v392 = vsel %vm120, %v389, 0
    %v394 = vsel %vm120, %v391, 0
    %396 = vmatpush.xpose.msra.mxu0 0.0
    %397 = vmatpush.xpose.msra.mxu0 0.0
    %398 = vmatpush.xpose.msra.mxu0 0.0
    %399 = vmatpush.xpose.msra.mxu0 0.0
    %400 = vmatpush.xpose.msra.mxu0 0.0
    %401 = vmatpush.xpose.msra.mxu0 0.0
    %402 = vmatpush.xpose.msra.mxu0 0.0
    %403 = vmatpush.xpose.msra.mxu0 0.0
    %404 = vmatpush.xpose.msra.mxu0 0.0
    %405 = vmatpush.xpose.msra.mxu0 0.0
    %406 = vmatpush.xpose.msra.mxu0 0.0
    %407 = vmatpush.xpose.msra.mxu0 0.0
    %408 = vmatpush.xpose.msra.mxu0 0.0
    %409 = vmatpush.xpose.msra.mxu0 0.0
    %410 = vmatpush.xpose.msra.mxu0 0.0
    %411 = vmatpush.xpose.msra.mxu0 %v394
    %412 = vmatmul.f32.gmra.mxu0 %v392
    %v413 = vpop.f32.mrf.mxu0
    %v414 = vadd.f32 0.0, %v413
    %415 = vdwg.mxu0
    %v416 = vsel %vm120, %v414, -inf
    %417 = vmax.xlane.f32.xlu0 %v416
    %v418 = vpop.xlane.xlu0 %417
    %v419 = vsub.f32 %v414, %v418
    %v420 = vmul.f32 %v419, 1.442695
    %v421 = vpow.pop %v420
    %v422 = vsel %vm120, %v421, 0.0
    %423 = vadd.xlane.f32.xlu0 %v422
    %v424 = vpop.xlane.xlu0 %423
    %v425 = vrcp.pop %v424
    %v426 = vmul.f32 %v421, %v425
    %s427 = scalar_lea.vmem [#allocation9], 24
    %428 = vst.msk [vmem:[%s427] sm:$0xff] %vm120, %v426
    %429 = vrot.lane.b32.xlu0 %v111, 40
    %v430 = vpop.permute.xlu0 %429
    %v433 = vsel %vm120, %v426, 0
    %435 = vmatpush.msra.mxu0 0.0
    %436 = vmatpush.msra.mxu0 0.0
    %437 = vmatpush.msra.mxu0 0.0
    %438 = vmatpush.msra.mxu0 0.0
    %439 = vmatpush.msra.mxu0 0.0
    %440 = vmatpush.msra.mxu0 0.0
    %441 = vmatpush.msra.mxu0 0.0
    %442 = vmatpush.msra.mxu0 0.0
    %443 = vmatpush.msra.mxu0 0.0
    %444 = vmatpush.msra.mxu0 0.0
    %445 = vmatpush.msra.mxu0 0.0
    %446 = vmatpush.msra.mxu0 0.0
    %447 = vmatpush.msra.mxu0 0.0
    %448 = vmatpush.msra.mxu0 0.0
    %449 = vmatpush.msra.mxu0 0.0
    %450 = vmatpush.msra.mxu0 %v430
    %451 = vmatmul.f32.gmra.mxu0 %v433
    %v452 = vpop.f32.mrf.mxu0
    %v453 = vadd.f32 0.0, %v452
    %454 = vdwg.mxu0
    %v456 = vsel %vm120, %v453, 0
    %458 = vmatpush.msra.mxu0 0.0
    %459 = vmatpush.msra.mxu0 0.0
    %460 = vmatpush.msra.mxu0 0.0
    %461 = vmatpush.msra.mxu0 0.0
    %462 = vmatpush.msra.mxu0 0.0
    %463 = vmatpush.msra.mxu0 0.0
    %464 = vmatpush.msra.mxu0 0.0
    %465 = vmatpush.msra.mxu0 0.0
    %466 = vmatpush.msra.mxu0 0.0
    %467 = vmatpush.msra.mxu0 0.0
    %468 = vmatpush.msra.mxu0 0.0
    %469 = vmatpush.msra.mxu0 0.0
    %470 = vmatpush.msra.mxu0 0.0
    %471 = vmatpush.msra.mxu0 0.0
    %472 = vmatpush.msra.mxu0 0.0
    %473 = vmatpush.msra.mxu0 %v79
    %474 = vmatmul.f32.gmra.mxu0 %v456
    %v475 = vpop.f32.mrf.mxu0
    %v476 = vadd.f32 0.0, %v475
    %477 = vdwg.mxu0
    %v478 = vadd.f32 %v387, %v476
    %v480 = vperm.slane %v80, 0
    %v482 = vadd.f32 %v478, %v480
    %483 = vst.msk [vmem:[#allocation8] sm:$0xff] %vm86, %v482
    %v484 = vmul.f32 %v114, 0.35355338
    %486 = vrot.lane.b32.xlu0 %v114, 96
    %v487 = vpop.permute.xlu0 %486
    %v489 = vsel %vm120, %v484, 0
    %v491 = vsel %vm120, %v487, 0
    %493 = vmatpush.xpose.msra.mxu0 0.0
    %494 = vmatpush.xpose.msra.mxu0 0.0
    %495 = vmatpush.xpose.msra.mxu0 0.0
    %496 = vmatpush.xpose.msra.mxu0 0.0
    %497 = vmatpush.xpose.msra.mxu0 0.0
    %498 = vmatpush.xpose.msra.mxu0 0.0
    %499 = vmatpush.xpose.msra.mxu0 0.0
    %500 = vmatpush.xpose.msra.mxu0 0.0
    %501 = vmatpush.xpose.msra.mxu0 0.0
    %502 = vmatpush.xpose.msra.mxu0 0.0
    %503 = vmatpush.xpose.msra.mxu0 0.0
    %504 = vmatpush.xpose.msra.mxu0 0.0
    %505 = vmatpush.xpose.msra.mxu0 0.0
    %506 = vmatpush.xpose.msra.mxu0 0.0
    %507 = vmatpush.xpose.msra.mxu0 0.0
    %508 = vmatpush.xpose.msra.mxu0 %v491
    %509 = vmatmul.f32.gmra.mxu0 %v489
    %v510 = vpop.f32.mrf.mxu0
    %v511 = vadd.f32 0.0, %v510
    %512 = vdwg.mxu0
    %v513 = vsel %vm120, %v511, -inf
    %514 = vmax.xlane.f32.xlu0 %v513
    %v515 = vpop.xlane.xlu0 %514
    %v516 = vsub.f32 %v511, %v515
    %v517 = vmul.f32 %v516, 1.442695
    %v518 = vpow.pop %v517
    %v519 = vsel %vm120, %v518, 0.0
    %520 = vadd.xlane.f32.xlu0 %v519
    %v521 = vpop.xlane.xlu0 %520
    %v522 = vrcp.pop %v521
    %v523 = vmul.f32 %v518, %v522
    %s524 = scalar_lea.vmem [#allocation9], 32
    %525 = vst.msk [vmem:[%s524] sm:$0xff] %vm120, %v523
    %526 = vrot.lane.b32.xlu0 %v114, 64
    %v527 = vpop.permute.xlu0 %526
    %v530 = vsel %vm120, %v523, 0
    %532 = vmatpush.msra.mxu0 0.0
    %533 = vmatpush.msra.mxu0 0.0
    %534 = vmatpush.msra.mxu0 0.0
    %535 = vmatpush.msra.mxu0 0.0
    %536 = vmatpush.msra.mxu0 0.0
    %537 = vmatpush.msra.mxu0 0.0
    %538 = vmatpush.msra.mxu0 0.0
    %539 = vmatpush.msra.mxu0 0.0
    %540 = vmatpush.msra.mxu0 0.0
    %541 = vmatpush.msra.mxu0 0.0
    %542 = vmatpush.msra.mxu0 0.0
    %543 = vmatpush.msra.mxu0 0.0
    %544 = vmatpush.msra.mxu0 0.0
    %545 = vmatpush.msra.mxu0 0.0
    %546 = vmatpush.msra.mxu0 0.0
    %547 = vmatpush.msra.mxu0 %v527
    %548 = vmatmul.f32.gmra.mxu0 %v530
    %v549 = vpop.f32.mrf.mxu0
    %v550 = vadd.f32 0.0, %v549
    %551 = vdwg.mxu0
    %552 = vrot.lane.b32.xlu0 %v484, 120
    %v553 = vpop.permute.xlu0 %552
    %554 = vrot.lane.b32.xlu0 %v114, 88
    %v555 = vpop.permute.xlu0 %554
    %v556 = vsel %vm120, %v553, 0
    %v558 = vsel %vm120, %v555, 0
    %560 = vmatpush.xpose.msra.mxu0 0.0
    %561 = vmatpush.xpose.msra.mxu0 0.0
    %562 = vmatpush.xpose.msra.mxu0 0.0
    %563 = vmatpush.xpose.msra.mxu0 0.0
    %564 = vmatpush.xpose.msra.mxu0 0.0
    %565 = vmatpush.xpose.msra.mxu0 0.0
    %566 = vmatpush.xpose.msra.mxu0 0.0
    %567 = vmatpush.xpose.msra.mxu0 0.0
    %568 = vmatpush.xpose.msra.mxu0 0.0
    %569 = vmatpush.xpose.msra.mxu0 0.0
    %570 = vmatpush.xpose.msra.mxu0 0.0
    %571 = vmatpush.xpose.msra.mxu0 0.0
    %572 = vmatpush.xpose.msra.mxu0 0.0
    %573 = vmatpush.xpose.msra.mxu0 0.0
    %574 = vmatpush.xpose.msra.mxu0 0.0
    %575 = vmatpush.xpose.msra.mxu0 %v558
    %576 = vmatmul.f32.gmra.mxu0 %v556
    %v577 = vpop.f32.mrf.mxu0
    %v578 = vadd.f32 0.0, %v577
    %579 = vdwg.mxu0
    %v580 = vsel %vm120, %v578, -inf
    %581 = vmax.xlane.f32.xlu0 %v580
    %v582 = vpop.xlane.xlu0 %581
    %v583 = vsub.f32 %v578, %v582
    %v584 = vmul.f32 %v583, 1.442695
    %v585 = vpow.pop %v584
    %v586 = vsel %vm120, %v585, 0.0
    %587 = vadd.xlane.f32.xlu0 %v586
    %v588 = vpop.xlane.xlu0 %587
    %v589 = vrcp.pop %v588
    %v590 = vmul.f32 %v585, %v589
    %s591 = scalar_lea.vmem [#allocation9], 40
    %592 = vst.msk [vmem:[%s591] sm:$0xff] %vm120, %v590
    %593 = vrot.lane.b32.xlu0 %v114, 56
    %v594 = vpop.permute.xlu0 %593
    %v597 = vsel %vm120, %v590, 0
    %599 = vmatpush.msra.mxu0 0.0
    %600 = vmatpush.msra.mxu0 0.0
    %601 = vmatpush.msra.mxu0 0.0
    %602 = vmatpush.msra.mxu0 0.0
    %603 = vmatpush.msra.mxu0 0.0
    %604 = vmatpush.msra.mxu0 0.0
    %605 = vmatpush.msra.mxu0 0.0
    %606 = vmatpush.msra.mxu0 0.0
    %607 = vmatpush.msra.mxu0 0.0
    %608 = vmatpush.msra.mxu0 0.0
    %609 = vmatpush.msra.mxu0 0.0
    %610 = vmatpush.msra.mxu0 0.0
    %611 = vmatpush.msra.mxu0 0.0
    %612 = vmatpush.msra.mxu0 0.0
    %613 = vmatpush.msra.mxu0 0.0
    %614 = vmatpush.msra.mxu0 %v594
    %615 = vmatmul.f32.gmra.mxu0 %v597
    %v616 = vpop.f32.mrf.mxu0
    %v617 = vadd.f32 0.0, %v616
    %618 = vdwg.mxu0
    %v620 = vsel %vm120, %v617, 0
    %622 = vmatpush.msra.mxu0 0.0
    %623 = vmatpush.msra.mxu0 0.0
    %624 = vmatpush.msra.mxu0 0.0
    %625 = vmatpush.msra.mxu0 0.0
    %626 = vmatpush.msra.mxu0 0.0
    %627 = vmatpush.msra.mxu0 0.0
    %628 = vmatpush.msra.mxu0 0.0
    %629 = vmatpush.msra.mxu0 0.0
    %630 = vmatpush.msra.mxu0 0.0
    %631 = vmatpush.msra.mxu0 0.0
    %632 = vmatpush.msra.mxu0 0.0
    %633 = vmatpush.msra.mxu0 0.0
    %634 = vmatpush.msra.mxu0 0.0
    %635 = vmatpush.msra.mxu0 0.0
    %636 = vmatpush.msra.mxu0 0.0
    %637 = vmatpush.msra.mxu0 %v77
    %638 = vmatmul.f32.gmra.mxu0 %v620
    %v639 = vpop.f32.mrf.mxu0
    %v640 = vadd.f32 0.0, %v639
    %641 = vdwg.mxu0
    %v643 = vsel %vm120, %v550, 0
    %645 = vmatpush.msra.mxu0 0.0
    %646 = vmatpush.msra.mxu0 0.0
    %647 = vmatpush.msra.mxu0 0.0
    %648 = vmatpush.msra.mxu0 0.0
    %649 = vmatpush.msra.mxu0 0.0
    %650 = vmatpush.msra.mxu0 0.0
    %651 = vmatpush.msra.mxu0 0.0
    %652 = vmatpush.msra.mxu0 0.0
    %653 = vmatpush.msra.mxu0 0.0
    %654 = vmatpush.msra.mxu0 0.0
    %655 = vmatpush.msra.mxu0 0.0
    %656 = vmatpush.msra.mxu0 0.0
    %657 = vmatpush.msra.mxu0 0.0
    %658 = vmatpush.msra.mxu0 0.0
    %659 = vmatpush.msra.mxu0 0.0
    %660 = vmatpush.msra.mxu0 %v76
    %661 = vmatmul.f32.gmra.mxu0 %v643
    %v662 = vpop.f32.mrf.mxu0
    %v663 = vadd.f32 %v640, %v662
    %664 = vdwg.mxu0
    %665 = vrot.lane.b32.xlu0 %v484, 112
    %v666 = vpop.permute.xlu0 %665
    %667 = vrot.lane.b32.xlu0 %v114, 80
    %v668 = vpop.permute.xlu0 %667
    %v669 = vsel %vm120, %v666, 0
    %v671 = vsel %vm120, %v668, 0
    %673 = vmatpush.xpose.msra.mxu0 0.0
    %674 = vmatpush.xpose.msra.mxu0 0.0
    %675 = vmatpush.xpose.msra.mxu0 0.0
    %676 = vmatpush.xpose.msra.mxu0 0.0
    %677 = vmatpush.xpose.msra.mxu0 0.0
    %678 = vmatpush.xpose.msra.mxu0 0.0
    %679 = vmatpush.xpose.msra.mxu0 0.0
    %680 = vmatpush.xpose.msra.mxu0 0.0
    %681 = vmatpush.xpose.msra.mxu0 0.0
    %682 = vmatpush.xpose.msra.mxu0 0.0
    %683 = vmatpush.xpose.msra.mxu0 0.0
    %684 = vmatpush.xpose.msra.mxu0 0.0
    %685 = vmatpush.xpose.msra.mxu0 0.0
    %686 = vmatpush.xpose.msra.mxu0 0.0
    %687 = vmatpush.xpose.msra.mxu0 0.0
    %688 = vmatpush.xpose.msra.mxu0 %v671
    %689 = vmatmul.f32.gmra.mxu0 %v669
    %v690 = vpop.f32.mrf.mxu0
    %v691 = vadd.f32 0.0, %v690
    %692 = vdwg.mxu0
    %v693 = vsel %vm120, %v691, -inf
    %694 = vmax.xlane.f32.xlu0 %v693
    %v695 = vpop.xlane.xlu0 %694
    %v696 = vsub.f32 %v691, %v695
    %v697 = vmul.f32 %v696, 1.442695
    %v698 = vpow.pop %v697
    %v699 = vsel %vm120, %v698, 0.0
    %700 = vadd.xlane.f32.xlu0 %v699
    %v701 = vpop.xlane.xlu0 %700
    %v702 = vrcp.pop %v701
    %v703 = vmul.f32 %v698, %v702
    %s704 = scalar_lea.vmem [#allocation9], 48
    %705 = vst.msk [vmem:[%s704] sm:$0xff] %vm120, %v703
    %706 = vrot.lane.b32.xlu0 %v114, 48
    %v707 = vpop.permute.xlu0 %706
    %v710 = vsel %vm120, %v703, 0
    %712 = vmatpush.msra.mxu0 0.0
    %713 = vmatpush.msra.mxu0 0.0
    %714 = vmatpush.msra.mxu0 0.0
    %715 = vmatpush.msra.mxu0 0.0
    %716 = vmatpush.msra.mxu0 0.0
    %717 = vmatpush.msra.mxu0 0.0
    %718 = vmatpush.msra.mxu0 0.0
    %719 = vmatpush.msra.mxu0 0.0
    %720 = vmatpush.msra.mxu0 0.0
    %721 = vmatpush.msra.mxu0 0.0
    %722 = vmatpush.msra.mxu0 0.0
    %723 = vmatpush.msra.mxu0 0.0
    %724 = vmatpush.msra.mxu0 0.0
    %725 = vmatpush.msra.mxu0 0.0
    %726 = vmatpush.msra.mxu0 0.0
    %727 = vmatpush.msra.mxu0 %v707
    %728 = vmatmul.f32.gmra.mxu0 %v710
    %v729 = vpop.f32.mrf.mxu0
    %v730 = vadd.f32 0.0, %v729
    %731 = vdwg.mxu0
    %v733 = vsel %vm120, %v730, 0
    %735 = vmatpush.msra.mxu0 0.0
    %736 = vmatpush.msra.mxu0 0.0
    %737 = vmatpush.msra.mxu0 0.0
    %738 = vmatpush.msra.mxu0 0.0
    %739 = vmatpush.msra.mxu0 0.0
    %740 = vmatpush.msra.mxu0 0.0
    %741 = vmatpush.msra.mxu0 0.0
    %742 = vmatpush.msra.mxu0 0.0
    %743 = vmatpush.msra.mxu0 0.0
    %744 = vmatpush.msra.mxu0 0.0
    %745 = vmatpush.msra.mxu0 0.0
    %746 = vmatpush.msra.mxu0 0.0
    %747 = vmatpush.msra.mxu0 0.0
    %748 = vmatpush.msra.mxu0 0.0
    %749 = vmatpush.msra.mxu0 0.0
    %750 = vmatpush.msra.mxu0 %v78
    %751 = vmatmul.f32.gmra.mxu0 %v733
    %v752 = vpop.f32.mrf.mxu0
    %v753 = vadd.f32 0.0, %v752
    %754 = vdwg.mxu0
    %v755 = vadd.f32 %v663, %v753
    %756 = vrot.lane.b32.xlu0 %v484, 104
    %v757 = vpop.permute.xlu0 %756
    %758 = vrot.lane.b32.xlu0 %v114, 72
    %v759 = vpop.permute.xlu0 %758
    %v760 = vsel %vm120, %v757, 0
    %v762 = vsel %vm120, %v759, 0
    %764 = vmatpush.xpose.msra.mxu0 0.0
    %765 = vmatpush.xpose.msra.mxu0 0.0
    %766 = vmatpush.xpose.msra.mxu0 0.0
    %767 = vmatpush.xpose.msra.mxu0 0.0
    %768 = vmatpush.xpose.msra.mxu0 0.0
    %769 = vmatpush.xpose.msra.mxu0 0.0
    %770 = vmatpush.xpose.msra.mxu0 0.0
    %771 = vmatpush.xpose.msra.mxu0 0.0
    %772 = vmatpush.xpose.msra.mxu0 0.0
    %773 = vmatpush.xpose.msra.mxu0 0.0
    %774 = vmatpush.xpose.msra.mxu0 0.0
    %775 = vmatpush.xpose.msra.mxu0 0.0
    %776 = vmatpush.xpose.msra.mxu0 0.0
    %777 = vmatpush.xpose.msra.mxu0 0.0
    %778 = vmatpush.xpose.msra.mxu0 0.0
    %779 = vmatpush.xpose.msra.mxu0 %v762
    %780 = vmatmul.f32.gmra.mxu0 %v760
    %v781 = vpop.f32.mrf.mxu0
    %v782 = vadd.f32 0.0, %v781
    %783 = vdwg.mxu0
    %v784 = vsel %vm120, %v782, -inf
    %785 = vmax.xlane.f32.xlu0 %v784
    %v786 = vpop.xlane.xlu0 %785
    %v787 = vsub.f32 %v782, %v786
    %v788 = vmul.f32 %v787, 1.442695
    %v789 = vpow.pop %v788
    %v790 = vsel %vm120, %v789, 0.0
    %791 = vadd.xlane.f32.xlu0 %v790
    %v792 = vpop.xlane.xlu0 %791
    %v793 = vrcp.pop %v792
    %v794 = vmul.f32 %v789, %v793
    %s795 = scalar_lea.vmem [#allocation9], 56
    %796 = vst.msk [vmem:[%s795] sm:$0xff] %vm120, %v794
    %797 = vrot.lane.b32.xlu0 %v114, 40
    %v798 = vpop.permute.xlu0 %797
    %v801 = vsel %vm120, %v794, 0
    %803 = vmatpush.msra.mxu0 0.0
    %804 = vmatpush.msra.mxu0 0.0
    %805 = vmatpush.msra.mxu0 0.0
    %806 = vmatpush.msra.mxu0 0.0
    %807 = vmatpush.msra.mxu0 0.0
    %808 = vmatpush.msra.mxu0 0.0
    %809 = vmatpush.msra.mxu0 0.0
    %810 = vmatpush.msra.mxu0 0.0
    %811 = vmatpush.msra.mxu0 0.0
    %812 = vmatpush.msra.mxu0 0.0
    %813 = vmatpush.msra.mxu0 0.0
    %814 = vmatpush.msra.mxu0 0.0
    %815 = vmatpush.msra.mxu0 0.0
    %816 = vmatpush.msra.mxu0 0.0
    %817 = vmatpush.msra.mxu0 0.0
    %818 = vmatpush.msra.mxu0 %v798
    %819 = vmatmul.f32.gmra.mxu0 %v801
    %v820 = vpop.f32.mrf.mxu0
    %v821 = vadd.f32 0.0, %v820
    %822 = vdwg.mxu0
    %v824 = vsel %vm120, %v821, 0
    %826 = vmatpush.msra.mxu0 0.0
    %827 = vmatpush.msra.mxu0 0.0
    %828 = vmatpush.msra.mxu0 0.0
    %829 = vmatpush.msra.mxu0 0.0
    %830 = vmatpush.msra.mxu0 0.0
    %831 = vmatpush.msra.mxu0 0.0
    %832 = vmatpush.msra.mxu0 0.0
    %833 = vmatpush.msra.mxu0 0.0
    %834 = vmatpush.msra.mxu0 0.0
    %835 = vmatpush.msra.mxu0 0.0
    %836 = vmatpush.msra.mxu0 0.0
    %837 = vmatpush.msra.mxu0 0.0
    %838 = vmatpush.msra.mxu0 0.0
    %839 = vmatpush.msra.mxu0 0.0
    %840 = vmatpush.msra.mxu0 0.0
    %841 = vmatpush.msra.mxu0 %v79
    %842 = vmatmul.f32.gmra.mxu0 %v824
    %v843 = vpop.f32.mrf.mxu0
    %v844 = vadd.f32 0.0, %v843
    %845 = vdwg.mxu0
    %v846 = vadd.f32 %v755, %v844
    %v847 = vadd.f32 %v846, %v480
    %848 = vst.msk [vmem:[#allocation8 + $0x8] sm:$0xff] %vm86, %v847
    // Predicated region
    $region34: #{tpu_custom_call.1} parent=1 // pred_check
      _
    $region35: #{tpu_custom_call.1} parent=1 // pred_check_branch
      %850 = sbr.rel (0) target = $region37
    $region36: #{tpu_custom_call.1} parent=1 // pred_region
      %852 = vsyncadd [#allocation4], 0
      %s853 = sshll.u32 [#allocation8], 4
      %s854 = int_to_ptr.vmem [resolvable:$true] %s853
      %s855 = sshll.u32 %s5, 4
      %s856 = int_to_ptr.hbm [resolvable:$true] %s855
      %861 = dma.vmem_to_hbm [thread:$0]  %s854, 256, %s856, [#allocation4], 128, 128, 8
    $region37: #{tpu_custom_call.1} parent=1 // pred_fallthru
      _
    // Predicated region
    $region38: #{tpu_custom_call.1} parent=1 // pred_check
      _
    $region39: #{tpu_custom_call.1} parent=1 // pred_check_branch
      %863 = sbr.rel (0) target = $region41
    $region40: #{tpu_custom_call.1} parent=1 // pred_region
      %865 = vsyncadd [#allocation10], 0
      %s866 = sshll.u32 [#allocation9], 4
      %s867 = int_to_ptr.vmem [resolvable:$true] %s866
      %s868 = sshll.u32 %s6, 4
      %s869 = int_to_ptr.hbm [resolvable:$true] %s868
      %874 = dma.vmem_to_hbm [thread:$0]  %s867, 1024, %s869, [#allocation10], 128, 128, 8
    $region41: #{tpu_custom_call.1} parent=1 // pred_fallthru
      _
    // Predicated region
    $region42: #{tpu_custom_call.1} parent=1 // pred_check
      _
    $region43: #{tpu_custom_call.1} parent=1 // pred_check_branch
      %876 = sbr.rel (0) target = $region45
    $region44: #{tpu_custom_call.1} parent=1 // pred_region
      %878 = dma.done [#allocation4], 256
    $region45: #{tpu_custom_call.1} parent=1 // pred_fallthru
      _
    // Predicated region
    $region46: #{tpu_custom_call.1} parent=1 // pred_check
      _
    $region47: #{tpu_custom_call.1} parent=1 // pred_check_branch
      %880 = sbr.rel (0) target = $region49
    $region48: #{tpu_custom_call.1} parent=1 // pred_region
      %882 = dma.done [#allocation10], 1024
    $region49: #{tpu_custom_call.1} parent=1 // pred_fallthru
      _
    %883 = vsyncpa [#allocation3], 1
    %884 = vsyncpa [#allocation6], 1
    %885 = vsyncpa [#allocation4], 1
    %886 = vsyncpa [#allocation10], 1

</llo_original>
